<compile_context>
chip_gen: v5e
topology: v5e:2x2
jax: 0.10.0
libtpu: 0.0.40
codegen_flags: <defaults>
</compile_context>

<pallas_src>
import functools

import jax
import jax.numpy as jnp
from jax.experimental import pallas as pl
from jax.experimental.pallas import tpu as pltpu


def _split_attention_kernel(x_ref, mask_ref, wqkv_ref, wp_ref, bp_ref, o_ref,
                            *, num_heads, block_b, apply_mask):
    H = num_heads
    bb = block_b
    M, C = x_ref.shape            # M = bb * N tokens in this block
    N = M // bb
    D = C // H
    cdt = x_ref.dtype             # MXU-feed dtype (bf16 fast path / f32 exact)
    f32 = jnp.float32

    # ---- fused q/k/v projection -------------------------------------------
    # One (M, C) @ (C, 3C) MXU matmul.  Weights are pre-transposed to
    # (in, out) and the softmax scale is pre-folded into the q columns in the
    # wrapper (qkv_bias=False in the module).  MXU accumulates in f32
    # internally; output is kept in the MXU-feed dtype for the next matmuls.
    qkv = jnp.dot(x_ref[...], wqkv_ref[...], preferred_element_type=cdt)  # (M, 3C)

    # ---- repack to head-batched (G, N, D), G = bb*H -------------------------
    # Built with safe ops only (static 2-D slices + stack along a new leading
    # axis).  The per-head lane slices are the one remaining relayout cost at
    # D < 128; see TODO(synk) in the header for the production-shape fix.
    def gather_heads(col0):
        tiles = []
        for b in range(bb):
            for h in range(H):
                tiles.append(qkv[b * N:(b + 1) * N,
                                 col0 + h * D:col0 + (h + 1) * D])
        return jnp.stack(tiles, axis=0)                        # (G, N, D)

    q = gather_heads(0)            # already scaled by head_dim ** -0.5
    k = gather_heads(C)
    v = gather_heads(2 * C)

    # ---- scores + softmax (all f32: v5e VPU/EUP have no bf16 path) ----------
    s = jnp.einsum('gnd,gkd->gnk', q, k,
                   preferred_element_type=f32)                 # (G, N, N) f32
    if apply_mask:
        # (G,1,N) key mask broadcast straight into the select -- no
        # materialized (N,N) mask.  finfo.min matches the PyTorch reference
        # semantics (fully-masked rows degenerate to a uniform distribution).
        s = jnp.where(mask_ref[...] > 0.0, jnp.finfo(f32).min, s)
    s = s - jnp.max(s, axis=-1, keepdims=True)
    p = jnp.exp(s)                                             # (G, N, N) f32
    l = jnp.sum(p, axis=-1, keepdims=True)                     # (G, N, 1) f32
    # attn_drop is Dropout(p=0.0) -> identity.

    # ---- ctx = (p @ v) / l : normalization deferred to the small ctx --------
    ctx = jnp.einsum('gnk,gkd->gnd', p.astype(cdt), v,
                     preferred_element_type=f32)               # (G, N, D) f32
    ctx = ctx / l                                              # exact, G*N*D ops

    # ---- repack heads into an (M, C) slab; ONE (M,C)@(C,C) projection -------
    rows = [jnp.concatenate([ctx[b * H + h] for h in range(H)], axis=-1)
            for b in range(bb)]                                # bb x (N, C)
    ctx_slab = rows[0] if bb == 1 else jnp.concatenate(rows, axis=0)   # (M, C)

    out = jnp.dot(ctx_slab.astype(cdt), wp_ref[...],
                  preferred_element_type=f32)                  # (M, C) f32
    out = out + bp_ref[...]                                    # proj bias
    # proj_drop is Dropout(p=0.0) -> identity.
    o_ref[...] = out.astype(o_ref.dtype)


def _vmem_limit_bytes():
    # Re-derive the VMEM budget per TPU generation (v5e/v6e: 128 MiB physical,
    # v7x: 64 MiB) instead of hard-coding one number.
    default = 32 * 1024 * 1024
    try:
        cap = getattr(pltpu.get_tpu_info(), "vmem_capacity_bytes", None)
        if cap:
            return int(min(cap * 3 // 4, 100 * 1024 * 1024))
    except Exception:
        pass
    return default


def split_attention(x, wq, wk, wv, wp, bp, *, num_heads, mask=None,
                    block_b=None, mxu_dtype=jnp.bfloat16):
    """Pallas forward of SplitAttention.

    x:            (B, N, C) float32
    wq/wk/wv/wp:  (C, C) in PyTorch Linear layout (out_features, in_features)
    bp:           (C,)   output-projection bias
    mask:         optional (B, N) bool -- True means "mask out this key"
    block_b:      batch rows per grid step (default: all of B in one step;
                  for production B*N*C pick it so x/o blocks + (G,N,N) scores
                  fit the per-generation VMEM budget)
    mxu_dtype:    dtype fed to the MXU (bf16 fast path; f32 for exact checks)
    """
    B, N, C = x.shape
    H = num_heads
    assert C % H == 0, "dim must be divisible by num_heads"
    if block_b is None:
        block_b = B
    assert B % block_b == 0, "B must be divisible by block_b"
    D = C // H
    scale = D ** (-0.5)

    # Weights: pre-transpose to (in, out), fuse q/k/v, fold the softmax scale
    # into the q columns (at most ~1 ulp from post-scaling; exact for D a
    # power of 4), and cast to the MXU-feed dtype (halves weight DMA bytes and
    # resident VMEM vs f32).
    w_qkv = jnp.concatenate([wq.T * scale, wk.T, wv.T], axis=1).astype(mxu_dtype)  # (C, 3C)
    wp_t = wp.T.astype(mxu_dtype)                                                   # (C, C)
    bp2 = bp.reshape(1, C).astype(jnp.float32)

    # Token-major activations: (B*N, C) so the fused qkv matmul is one fat
    # MXU call per grid step.
    x2d = x.astype(mxu_dtype).reshape(B * N, C)

    # Key mask as a float flag (1.0 = masked), pre-broadcast over heads so the
    # kernel can index it with the collapsed (batch-row, head) axis.
    if mask is None:
        mask_flag = jnp.zeros((B * H, 1, N), jnp.float32)
    else:
        mask_flag = jnp.broadcast_to(
            mask.reshape(B, 1, 1, N).astype(jnp.float32),
            (B, H, 1, N)).reshape(B * H, 1, N)

    kernel = functools.partial(_split_attention_kernel, num_heads=H,
                               block_b=block_b, apply_mask=mask is not None)

    nb = B // block_b
    # NOTE: weight BlockSpecs use constant index maps, so they are not
    # re-DMA'd across grid steps.  TODO(synk): single-buffer them
    # (pipeline_mode=pl.Buffered(1)) for large C, esp. on v7x.
    out2d = pl.pallas_call(
        kernel,
        out_shape=jax.ShapeDtypeStruct((B * N, C), x.dtype),
        grid=(nb,),
        in_specs=[
            pl.BlockSpec((block_b * N, C), lambda i: (i, 0)),       # x tokens
            pl.BlockSpec((block_b * H, 1, N), lambda i: (i, 0, 0)),  # key mask
            pl.BlockSpec((C, 3 * C), lambda i: (0, 0)),              # fused qkv W
            pl.BlockSpec((C, C), lambda i: (0, 0)),                  # proj W
            pl.BlockSpec((1, C), lambda i: (0, 0)),                  # proj bias
        ],
        out_specs=pl.BlockSpec((block_b * N, C), lambda i: (i, 0)),
        compiler_params=pltpu.CompilerParams(
            dimension_semantics=("parallel",),   # batch blocks independent
            vmem_limit_bytes=_vmem_limit_bytes()),
    )(x2d, mask_flag, w_qkv, wp_t, bp2)

    return out2d.reshape(B, N, C)


def _reference(x, wq, wk, wv, wp, bp, *, num_heads, mask=None):
    """Pure-JAX f32 port of the PyTorch forward for verification."""
    B, N, C = x.shape
    D = C // num_heads
    scale = D ** (-0.5)
    q = (x @ wq.T).reshape(B, N, num_heads, D).transpose(0, 2, 1, 3)
    k = (x @ wk.T).reshape(B, N, num_heads, D).transpose(0, 2, 1, 3)
    v = (x @ wv.T).reshape(B, N, num_heads, D).transpose(0, 2, 1, 3)
    attn = jnp.einsum("bhqd,bhkd->bhqk", q, k) * scale
    if mask is not None:
        attn = jnp.where(mask[:, None, None, :],
                         jnp.finfo(attn.dtype).min, attn)
    attn = jax.nn.softmax(attn, axis=-1)
    out = jnp.einsum("bhqk,bhkd->bhqd", attn, v)
    out = out.transpose(0, 2, 1, 3).reshape(B, N, C)
    return out @ wp.T + bp


if __name__ == "__main__":
    B, N, C, H = 2, 8, 32, 8   # dim=32, num_heads=8 -> head_dim=4

    key = jax.random.PRNGKey(0)
    kx, kq, kk, kv, kp, kb, km = jax.random.split(key, 7)

    x = jax.random.normal(kx, (B, N, C), dtype=jnp.float32)
    # deterministic synthetic parameter init (PyTorch Linear-like uniform scale)
    lim = 1.0 / (C ** 0.5)
    wq = jax.random.uniform(kq, (C, C), jnp.float32, -lim, lim)
    wk = jax.random.uniform(kk, (C, C), jnp.float32, -lim, lim)
    wv = jax.random.uniform(kv, (C, C), jnp.float32, -lim, lim)
    wp = jax.random.uniform(kp, (C, C), jnp.float32, -lim, lim)
    bp = jax.random.uniform(kb, (C,), jnp.float32, -lim, lim)
    mask = jax.random.uniform(km, (B, N)) < 0.25   # mask ~25% of key positions

    ref = _reference(x, wq, wk, wv, wp, bp, num_heads=H, mask=mask)

    # exact path (f32 MXU feed): tight tolerance, checks the algorithm itself
    out_f32 = jax.block_until_ready(
        split_attention(x, wq, wk, wv, wp, bp, num_heads=H, mask=mask,
                        mxu_dtype=jnp.float32))
    assert out_f32.shape == (B, N, C)
    assert jnp.allclose(out_f32, ref, atol=1e-4, rtol=1e-4)

    # default fast path: bf16 MXU operands, f32 accumulation & f32 softmax
    # (tolerance accounts for bf16 operand rounding only)
    out_bf16 = jax.block_until_ready(
        split_attention(x, wq, wk, wv, wp, bp, num_heads=H, mask=mask))
    assert jnp.allclose(out_bf16, ref, atol=5e-2, rtol=5e-2)

    # mask=None path
    out_nm = jax.block_until_ready(
        split_attention(x, wq, wk, wv, wp, bp, num_heads=H, mask=None))
    ref_nm = _reference(x, wq, wk, wv, wp, bp, num_heads=H, mask=None)
    assert jnp.allclose(out_nm, ref_nm, atol=5e-2, rtol=5e-2)

    print("KERNEL_OK")
</pallas_src>

<mosaic_0001>
module attributes {stable_mosaic.version = 11 : i64} {
  func.func @_split_attention_kernel(%arg0: i32, %arg1: memref<16x32xf32, #tpu.memory_space<vmem>>, %arg2: memref<16x1x8xf32, #tpu.memory_space<vmem>>, %arg3: memref<32x96xf32, #tpu.memory_space<vmem>>, %arg4: memref<32x32xf32, #tpu.memory_space<vmem>>, %arg5: memref<1x32xf32, #tpu.memory_space<vmem>>, %arg6: memref<16x32xf32, #tpu.memory_space<vmem>>) attributes {dimension_semantics = [#tpu.dimension_semantics<parallel>], iteration_bounds = array<i64: 1>, scalar_prefetch = 0 : i64, scratch_operands = 0 : i64, tpu.core_type = #tpu.core_type<tc>, window_params = [{transform_indices = @transform_0, window_bounds = array<i64: 16, 32>}, {transform_indices = @transform_1, window_bounds = array<i64: 16, 1, 8>}, {pipeline_mode = #tpu.pipeline_mode<synchronous>, transform_indices = @transform_2, window_bounds = array<i64: 32, 96>}, {pipeline_mode = #tpu.pipeline_mode<synchronous>, transform_indices = @transform_3, window_bounds = array<i64: 32, 32>}, {pipeline_mode = #tpu.pipeline_mode<synchronous>, transform_indices = @transform_4, window_bounds = array<i64: 1, 32>}, {transform_indices = @transform_5, window_bounds = array<i64: 16, 32>}]} {
    %c0 = arith.constant 0 : index
    %c0_0 = arith.constant 0 : index
    %0 = vector.load %arg1[%c0, %c0_0] : memref<16x32xf32, #tpu.memory_space<vmem>>, vector<16x32xf32>
    %c0_1 = arith.constant 0 : index
    %c0_2 = arith.constant 0 : index
    %1 = vector.load %arg3[%c0_1, %c0_2] : memref<32x96xf32, #tpu.memory_space<vmem>>, vector<32x96xf32>
    %cst = arith.constant dense<0.000000e+00> : vector<16x96xf32>
    %2 = tpu.matmul %0, %1, %cst {dimension_numbers = #tpu.dot_dimension_numbers<[1], [0], [0], [1], [0, 0, 1, 1], [], []>} : vector<16x32xf32>, vector<32x96xf32>, vector<16x96xf32> -> vector<16x96xf32>
    %3 = vector.extract_strided_slice %2 {offsets = [0, 0], sizes = [8, 4], strides = [1, 1]} : vector<16x96xf32> to vector<8x4xf32>
    %4 = vector.extract_strided_slice %2 {offsets = [0, 4], sizes = [8, 4], strides = [1, 1]} : vector<16x96xf32> to vector<8x4xf32>
    %5 = vector.extract_strided_slice %2 {offsets = [0, 8], sizes = [8, 4], strides = [1, 1]} : vector<16x96xf32> to vector<8x4xf32>
    %6 = vector.extract_strided_slice %2 {offsets = [0, 12], sizes = [8, 4], strides = [1, 1]} : vector<16x96xf32> to vector<8x4xf32>
    %7 = vector.extract_strided_slice %2 {offsets = [0, 16], sizes = [8, 4], strides = [1, 1]} : vector<16x96xf32> to vector<8x4xf32>
    %8 = vector.extract_strided_slice %2 {offsets = [0, 20], sizes = [8, 4], strides = [1, 1]} : vector<16x96xf32> to vector<8x4xf32>
    %9 = vector.extract_strided_slice %2 {offsets = [0, 24], sizes = [8, 4], strides = [1, 1]} : vector<16x96xf32> to vector<8x4xf32>
    %10 = vector.extract_strided_slice %2 {offsets = [0, 28], sizes = [8, 4], strides = [1, 1]} : vector<16x96xf32> to vector<8x4xf32>
    %11 = vector.extract_strided_slice %2 {offsets = [8, 0], sizes = [8, 4], strides = [1, 1]} : vector<16x96xf32> to vector<8x4xf32>
    %12 = vector.extract_strided_slice %2 {offsets = [8, 4], sizes = [8, 4], strides = [1, 1]} : vector<16x96xf32> to vector<8x4xf32>
    %13 = vector.extract_strided_slice %2 {offsets = [8, 8], sizes = [8, 4], strides = [1, 1]} : vector<16x96xf32> to vector<8x4xf32>
    %14 = vector.extract_strided_slice %2 {offsets = [8, 12], sizes = [8, 4], strides = [1, 1]} : vector<16x96xf32> to vector<8x4xf32>
    %15 = vector.extract_strided_slice %2 {offsets = [8, 16], sizes = [8, 4], strides = [1, 1]} : vector<16x96xf32> to vector<8x4xf32>
    %16 = vector.extract_strided_slice %2 {offsets = [8, 20], sizes = [8, 4], strides = [1, 1]} : vector<16x96xf32> to vector<8x4xf32>
    %17 = vector.extract_strided_slice %2 {offsets = [8, 24], sizes = [8, 4], strides = [1, 1]} : vector<16x96xf32> to vector<8x4xf32>
    %18 = vector.extract_strided_slice %2 {offsets = [8, 28], sizes = [8, 4], strides = [1, 1]} : vector<16x96xf32> to vector<8x4xf32>
    %19 = vector.shape_cast %3 : vector<8x4xf32> to vector<1x8x4xf32>
    %20 = vector.shape_cast %4 : vector<8x4xf32> to vector<1x8x4xf32>
    %21 = vector.shape_cast %5 : vector<8x4xf32> to vector<1x8x4xf32>
    %22 = vector.shape_cast %6 : vector<8x4xf32> to vector<1x8x4xf32>
    %23 = vector.shape_cast %7 : vector<8x4xf32> to vector<1x8x4xf32>
    %24 = vector.shape_cast %8 : vector<8x4xf32> to vector<1x8x4xf32>
    %25 = vector.shape_cast %9 : vector<8x4xf32> to vector<1x8x4xf32>
    %26 = vector.shape_cast %10 : vector<8x4xf32> to vector<1x8x4xf32>
    %27 = vector.shape_cast %11 : vector<8x4xf32> to vector<1x8x4xf32>
    %28 = vector.shape_cast %12 : vector<8x4xf32> to vector<1x8x4xf32>
    %29 = vector.shape_cast %13 : vector<8x4xf32> to vector<1x8x4xf32>
    %30 = vector.shape_cast %14 : vector<8x4xf32> to vector<1x8x4xf32>
    %31 = vector.shape_cast %15 : vector<8x4xf32> to vector<1x8x4xf32>
    %32 = vector.shape_cast %16 : vector<8x4xf32> to vector<1x8x4xf32>
    %33 = vector.shape_cast %17 : vector<8x4xf32> to vector<1x8x4xf32>
    %34 = vector.shape_cast %18 : vector<8x4xf32> to vector<1x8x4xf32>
    %35 = tpu.concatenate %19, %20, %21, %22, %23, %24, %25, %26, %27, %28, %29, %30, %31, %32, %33, %34 in 0 : vector<1x8x4xf32>, vector<1x8x4xf32>, vector<1x8x4xf32>, vector<1x8x4xf32>, vector<1x8x4xf32>, vector<1x8x4xf32>, vector<1x8x4xf32>, vector<1x8x4xf32>, vector<1x8x4xf32>, vector<1x8x4xf32>, vector<1x8x4xf32>, vector<1x8x4xf32>, vector<1x8x4xf32>, vector<1x8x4xf32>, vector<1x8x4xf32>, vector<1x8x4xf32> -> vector<16x8x4xf32>
    %36 = vector.extract_strided_slice %2 {offsets = [0, 32], sizes = [8, 4], strides = [1, 1]} : vector<16x96xf32> to vector<8x4xf32>
    %37 = vector.extract_strided_slice %2 {offsets = [0, 36], sizes = [8, 4], strides = [1, 1]} : vector<16x96xf32> to vector<8x4xf32>
    %38 = vector.extract_strided_slice %2 {offsets = [0, 40], sizes = [8, 4], strides = [1, 1]} : vector<16x96xf32> to vector<8x4xf32>
    %39 = vector.extract_strided_slice %2 {offsets = [0, 44], sizes = [8, 4], strides = [1, 1]} : vector<16x96xf32> to vector<8x4xf32>
    %40 = vector.extract_strided_slice %2 {offsets = [0, 48], sizes = [8, 4], strides = [1, 1]} : vector<16x96xf32> to vector<8x4xf32>
    %41 = vector.extract_strided_slice %2 {offsets = [0, 52], sizes = [8, 4], strides = [1, 1]} : vector<16x96xf32> to vector<8x4xf32>
    %42 = vector.extract_strided_slice %2 {offsets = [0, 56], sizes = [8, 4], strides = [1, 1]} : vector<16x96xf32> to vector<8x4xf32>
    %43 = vector.extract_strided_slice %2 {offsets = [0, 60], sizes = [8, 4], strides = [1, 1]} : vector<16x96xf32> to vector<8x4xf32>
    %44 = vector.extract_strided_slice %2 {offsets = [8, 32], sizes = [8, 4], strides = [1, 1]} : vector<16x96xf32> to vector<8x4xf32>
    %45 = vector.extract_strided_slice %2 {offsets = [8, 36], sizes = [8, 4], strides = [1, 1]} : vector<16x96xf32> to vector<8x4xf32>
    %46 = vector.extract_strided_slice %2 {offsets = [8, 40], sizes = [8, 4], strides = [1, 1]} : vector<16x96xf32> to vector<8x4xf32>
    %47 = vector.extract_strided_slice %2 {offsets = [8, 44], sizes = [8, 4], strides = [1, 1]} : vector<16x96xf32> to vector<8x4xf32>
    %48 = vector.extract_strided_slice %2 {offsets = [8, 48], sizes = [8, 4], strides = [1, 1]} : vector<16x96xf32> to vector<8x4xf32>
    %49 = vector.extract_strided_slice %2 {offsets = [8, 52], sizes = [8, 4], strides = [1, 1]} : vector<16x96xf32> to vector<8x4xf32>
    %50 = vector.extract_strided_slice %2 {offsets = [8, 56], sizes = [8, 4], strides = [1, 1]} : vector<16x96xf32> to vector<8x4xf32>
    %51 = vector.extract_strided_slice %2 {offsets = [8, 60], sizes = [8, 4], strides = [1, 1]} : vector<16x96xf32> to vector<8x4xf32>
    %52 = vector.shape_cast %36 : vector<8x4xf32> to vector<1x8x4xf32>
    %53 = vector.shape_cast %37 : vector<8x4xf32> to vector<1x8x4xf32>
    %54 = vector.shape_cast %38 : vector<8x4xf32> to vector<1x8x4xf32>
    %55 = vector.shape_cast %39 : vector<8x4xf32> to vector<1x8x4xf32>
    %56 = vector.shape_cast %40 : vector<8x4xf32> to vector<1x8x4xf32>
    %57 = vector.shape_cast %41 : vector<8x4xf32> to vector<1x8x4xf32>
    %58 = vector.shape_cast %42 : vector<8x4xf32> to vector<1x8x4xf32>
    %59 = vector.shape_cast %43 : vector<8x4xf32> to vector<1x8x4xf32>
    %60 = vector.shape_cast %44 : vector<8x4xf32> to vector<1x8x4xf32>
    %61 = vector.shape_cast %45 : vector<8x4xf32> to vector<1x8x4xf32>
    %62 = vector.shape_cast %46 : vector<8x4xf32> to vector<1x8x4xf32>
    %63 = vector.shape_cast %47 : vector<8x4xf32> to vector<1x8x4xf32>
    %64 = vector.shape_cast %48 : vector<8x4xf32> to vector<1x8x4xf32>
    %65 = vector.shape_cast %49 : vector<8x4xf32> to vector<1x8x4xf32>
    %66 = vector.shape_cast %50 : vector<8x4xf32> to vector<1x8x4xf32>
    %67 = vector.shape_cast %51 : vector<8x4xf32> to vector<1x8x4xf32>
    %68 = tpu.concatenate %52, %53, %54, %55, %56, %57, %58, %59, %60, %61, %62, %63, %64, %65, %66, %67 in 0 : vector<1x8x4xf32>, vector<1x8x4xf32>, vector<1x8x4xf32>, vector<1x8x4xf32>, vector<1x8x4xf32>, vector<1x8x4xf32>, vector<1x8x4xf32>, vector<1x8x4xf32>, vector<1x8x4xf32>, vector<1x8x4xf32>, vector<1x8x4xf32>, vector<1x8x4xf32>, vector<1x8x4xf32>, vector<1x8x4xf32>, vector<1x8x4xf32>, vector<1x8x4xf32> -> vector<16x8x4xf32>
    %69 = vector.extract_strided_slice %2 {offsets = [0, 64], sizes = [8, 4], strides = [1, 1]} : vector<16x96xf32> to vector<8x4xf32>
    %70 = vector.extract_strided_slice %2 {offsets = [0, 68], sizes = [8, 4], strides = [1, 1]} : vector<16x96xf32> to vector<8x4xf32>
    %71 = vector.extract_strided_slice %2 {offsets = [0, 72], sizes = [8, 4], strides = [1, 1]} : vector<16x96xf32> to vector<8x4xf32>
    %72 = vector.extract_strided_slice %2 {offsets = [0, 76], sizes = [8, 4], strides = [1, 1]} : vector<16x96xf32> to vector<8x4xf32>
    %73 = vector.extract_strided_slice %2 {offsets = [0, 80], sizes = [8, 4], strides = [1, 1]} : vector<16x96xf32> to vector<8x4xf32>
    %74 = vector.extract_strided_slice %2 {offsets = [0, 84], sizes = [8, 4], strides = [1, 1]} : vector<16x96xf32> to vector<8x4xf32>
    %75 = vector.extract_strided_slice %2 {offsets = [0, 88], sizes = [8, 4], strides = [1, 1]} : vector<16x96xf32> to vector<8x4xf32>
    %76 = vector.extract_strided_slice %2 {offsets = [0, 92], sizes = [8, 4], strides = [1, 1]} : vector<16x96xf32> to vector<8x4xf32>
    %77 = vector.extract_strided_slice %2 {offsets = [8, 64], sizes = [8, 4], strides = [1, 1]} : vector<16x96xf32> to vector<8x4xf32>
    %78 = vector.extract_strided_slice %2 {offsets = [8, 68], sizes = [8, 4], strides = [1, 1]} : vector<16x96xf32> to vector<8x4xf32>
    %79 = vector.extract_strided_slice %2 {offsets = [8, 72], sizes = [8, 4], strides = [1, 1]} : vector<16x96xf32> to vector<8x4xf32>
    %80 = vector.extract_strided_slice %2 {offsets = [8, 76], sizes = [8, 4], strides = [1, 1]} : vector<16x96xf32> to vector<8x4xf32>
    %81 = vector.extract_strided_slice %2 {offsets = [8, 80], sizes = [8, 4], strides = [1, 1]} : vector<16x96xf32> to vector<8x4xf32>
    %82 = vector.extract_strided_slice %2 {offsets = [8, 84], sizes = [8, 4], strides = [1, 1]} : vector<16x96xf32> to vector<8x4xf32>
    %83 = vector.extract_strided_slice %2 {offsets = [8, 88], sizes = [8, 4], strides = [1, 1]} : vector<16x96xf32> to vector<8x4xf32>
    %84 = vector.extract_strided_slice %2 {offsets = [8, 92], sizes = [8, 4], strides = [1, 1]} : vector<16x96xf32> to vector<8x4xf32>
    %85 = vector.shape_cast %69 : vector<8x4xf32> to vector<1x8x4xf32>
    %86 = vector.shape_cast %70 : vector<8x4xf32> to vector<1x8x4xf32>
    %87 = vector.shape_cast %71 : vector<8x4xf32> to vector<1x8x4xf32>
    %88 = vector.shape_cast %72 : vector<8x4xf32> to vector<1x8x4xf32>
    %89 = vector.shape_cast %73 : vector<8x4xf32> to vector<1x8x4xf32>
    %90 = vector.shape_cast %74 : vector<8x4xf32> to vector<1x8x4xf32>
    %91 = vector.shape_cast %75 : vector<8x4xf32> to vector<1x8x4xf32>
    %92 = vector.shape_cast %76 : vector<8x4xf32> to vector<1x8x4xf32>
    %93 = vector.shape_cast %77 : vector<8x4xf32> to vector<1x8x4xf32>
    %94 = vector.shape_cast %78 : vector<8x4xf32> to vector<1x8x4xf32>
    %95 = vector.shape_cast %79 : vector<8x4xf32> to vector<1x8x4xf32>
    %96 = vector.shape_cast %80 : vector<8x4xf32> to vector<1x8x4xf32>
    %97 = vector.shape_cast %81 : vector<8x4xf32> to vector<1x8x4xf32>
    %98 = vector.shape_cast %82 : vector<8x4xf32> to vector<1x8x4xf32>
    %99 = vector.shape_cast %83 : vector<8x4xf32> to vector<1x8x4xf32>
    %100 = vector.shape_cast %84 : vector<8x4xf32> to vector<1x8x4xf32>
    %101 = tpu.concatenate %85, %86, %87, %88, %89, %90, %91, %92, %93, %94, %95, %96, %97, %98, %99, %100 in 0 : vector<1x8x4xf32>, vector<1x8x4xf32>, vector<1x8x4xf32>, vector<1x8x4xf32>, vector<1x8x4xf32>, vector<1x8x4xf32>, vector<1x8x4xf32>, vector<1x8x4xf32>, vector<1x8x4xf32>, vector<1x8x4xf32>, vector<1x8x4xf32>, vector<1x8x4xf32>, vector<1x8x4xf32>, vector<1x8x4xf32>, vector<1x8x4xf32>, vector<1x8x4xf32> -> vector<16x8x4xf32>
    "tpu.trace_start"() <{level = 10 : i32, message = "gnd,gkd->gnk"}> : () -> ()
    %cst_3 = arith.constant dense<0.000000e+00> : vector<16x8x8xf32>
    %102 = tpu.matmul %35, %68, %cst_3 {dimension_numbers = #tpu.dot_dimension_numbers<[2], [2], [1], [1], [0, 0, 0, 1, 1, 1], [0], [0]>} : vector<16x8x4xf32>, vector<16x8x4xf32>, vector<16x8x8xf32> -> vector<16x8x8xf32>
    "tpu.trace_stop"() : () -> ()
    %c0_4 = arith.constant 0 : index
    %c0_5 = arith.constant 0 : index
    %c0_6 = arith.constant 0 : index
    %103 = vector.load %arg2[%c0_4, %c0_5, %c0_6] : memref<16x1x8xf32, #tpu.memory_space<vmem>>, vector<16x1x8xf32>
    %cst_7 = arith.constant 0.000000e+00 : f32
    %104 = vector.broadcast %cst_7 : f32 to vector<16x1x8xf32>
    %105 = arith.cmpf ogt, %103, %104 : vector<16x1x8xf32>
    %cst_8 = arith.constant -3.40282347E+38 : f32
    %106 = vector.shape_cast %105 : vector<16x1x8xi1> to vector<16x1x8xi1>
    %107 = vector.broadcast %106 : vector<16x1x8xi1> to vector<16x8x8xi1>
    %108 = vector.broadcast %cst_8 : f32 to vector<16x8x8xf32>
    %109 = arith.select %107, %108, %102 : vector<16x8x8xi1>, vector<16x8x8xf32>
    %cst_9 = arith.constant dense<0xFF800000> : vector<16x8xf32>
    %110 = vector.multi_reduction <maximumf>, %109, %cst_9 [2] : vector<16x8x8xf32> to vector<16x8xf32>
    %111 = vector.shape_cast %110 : vector<16x8xf32> to vector<16x8x1xf32>
    %112 = vector.broadcast %111 : vector<16x8x1xf32> to vector<16x8x8xf32>
    %113 = arith.subf %109, %112 : vector<16x8x8xf32>
    %114 = math.exp %113 : vector<16x8x8xf32>
    %cst_10 = arith.constant dense<0.000000e+00> : vector<16x8xf32>
    %115 = vector.multi_reduction <add>, %114, %cst_10 [2] : vector<16x8x8xf32> to vector<16x8xf32>
    %116 = vector.shape_cast %115 : vector<16x8xf32> to vector<16x8x1xf32>
    "tpu.trace_start"() <{level = 10 : i32, message = "gnk,gkd->gnd"}> : () -> ()
    %cst_11 = arith.constant dense<0.000000e+00> : vector<16x8x4xf32>
    %117 = tpu.matmul %114, %101, %cst_11 {dimension_numbers = #tpu.dot_dimension_numbers<[2], [1], [1], [2], [0, 0, 0, 1, 1, 2], [0], [0]>} : vector<16x8x8xf32>, vector<16x8x4xf32>, vector<16x8x4xf32> -> vector<16x8x4xf32>
    "tpu.trace_stop"() : () -> ()
    %118 = vector.broadcast %116 : vector<16x8x1xf32> to vector<16x8x4xf32>
    %119 = arith.divf %117, %118 : vector<16x8x4xf32>
    %120 = vector.extract_strided_slice %119 {offsets = [0, 0, 0], sizes = [1, 8, 4], strides = [1, 1, 1]} : vector<16x8x4xf32> to vector<1x8x4xf32>
    %121 = vector.shape_cast %120 : vector<1x8x4xf32> to vector<8x4xf32>
    %122 = vector.extract_strided_slice %119 {offsets = [1, 0, 0], sizes = [1, 8, 4], strides = [1, 1, 1]} : vector<16x8x4xf32> to vector<1x8x4xf32>
    %123 = vector.shape_cast %122 : vector<1x8x4xf32> to vector<8x4xf32>
    %124 = vector.extract_strided_slice %119 {offsets = [2, 0, 0], sizes = [1, 8, 4], strides = [1, 1, 1]} : vector<16x8x4xf32> to vector<1x8x4xf32>
    %125 = vector.shape_cast %124 : vector<1x8x4xf32> to vector<8x4xf32>
    %126 = vector.extract_strided_slice %119 {offsets = [3, 0, 0], sizes = [1, 8, 4], strides = [1, 1, 1]} : vector<16x8x4xf32> to vector<1x8x4xf32>
    %127 = vector.shape_cast %126 : vector<1x8x4xf32> to vector<8x4xf32>
    %128 = vector.extract_strided_slice %119 {offsets = [4, 0, 0], sizes = [1, 8, 4], strides = [1, 1, 1]} : vector<16x8x4xf32> to vector<1x8x4xf32>
    %129 = vector.shape_cast %128 : vector<1x8x4xf32> to vector<8x4xf32>
    %130 = vector.extract_strided_slice %119 {offsets = [5, 0, 0], sizes = [1, 8, 4], strides = [1, 1, 1]} : vector<16x8x4xf32> to vector<1x8x4xf32>
    %131 = vector.shape_cast %130 : vector<1x8x4xf32> to vector<8x4xf32>
    %132 = vector.extract_strided_slice %119 {offsets = [6, 0, 0], sizes = [1, 8, 4], strides = [1, 1, 1]} : vector<16x8x4xf32> to vector<1x8x4xf32>
    %133 = vector.shape_cast %132 : vector<1x8x4xf32> to vector<8x4xf32>
    %134 = vector.extract_strided_slice %119 {offsets = [7, 0, 0], sizes = [1, 8, 4], strides = [1, 1, 1]} : vector<16x8x4xf32> to vector<1x8x4xf32>
    %135 = vector.shape_cast %134 : vector<1x8x4xf32> to vector<8x4xf32>
    %136 = tpu.concatenate %121, %123, %125, %127, %129, %131, %133, %135 in 1 : vector<8x4xf32>, vector<8x4xf32>, vector<8x4xf32>, vector<8x4xf32>, vector<8x4xf32>, vector<8x4xf32>, vector<8x4xf32>, vector<8x4xf32> -> vector<8x32xf32>
    %137 = vector.extract_strided_slice %119 {offsets = [8, 0, 0], sizes = [1, 8, 4], strides = [1, 1, 1]} : vector<16x8x4xf32> to vector<1x8x4xf32>
    %138 = vector.shape_cast %137 : vector<1x8x4xf32> to vector<8x4xf32>
    %139 = vector.extract_strided_slice %119 {offsets = [9, 0, 0], sizes = [1, 8, 4], strides = [1, 1, 1]} : vector<16x8x4xf32> to vector<1x8x4xf32>
    %140 = vector.shape_cast %139 : vector<1x8x4xf32> to vector<8x4xf32>
    %141 = vector.extract_strided_slice %119 {offsets = [10, 0, 0], sizes = [1, 8, 4], strides = [1, 1, 1]} : vector<16x8x4xf32> to vector<1x8x4xf32>
    %142 = vector.shape_cast %141 : vector<1x8x4xf32> to vector<8x4xf32>
    %143 = vector.extract_strided_slice %119 {offsets = [11, 0, 0], sizes = [1, 8, 4], strides = [1, 1, 1]} : vector<16x8x4xf32> to vector<1x8x4xf32>
    %144 = vector.shape_cast %143 : vector<1x8x4xf32> to vector<8x4xf32>
    %145 = vector.extract_strided_slice %119 {offsets = [12, 0, 0], sizes = [1, 8, 4], strides = [1, 1, 1]} : vector<16x8x4xf32> to vector<1x8x4xf32>
    %146 = vector.shape_cast %145 : vector<1x8x4xf32> to vector<8x4xf32>
    %147 = vector.extract_strided_slice %119 {offsets = [13, 0, 0], sizes = [1, 8, 4], strides = [1, 1, 1]} : vector<16x8x4xf32> to vector<1x8x4xf32>
    %148 = vector.shape_cast %147 : vector<1x8x4xf32> to vector<8x4xf32>
    %149 = vector.extract_strided_slice %119 {offsets = [14, 0, 0], sizes = [1, 8, 4], strides = [1, 1, 1]} : vector<16x8x4xf32> to vector<1x8x4xf32>
    %150 = vector.shape_cast %149 : vector<1x8x4xf32> to vector<8x4xf32>
    %151 = vector.extract_strided_slice %119 {offsets = [15, 0, 0], sizes = [1, 8, 4], strides = [1, 1, 1]} : vector<16x8x4xf32> to vector<1x8x4xf32>
    %152 = vector.shape_cast %151 : vector<1x8x4xf32> to vector<8x4xf32>
    %153 = tpu.concatenate %138, %140, %142, %144, %146, %148, %150, %152 in 1 : vector<8x4xf32>, vector<8x4xf32>, vector<8x4xf32>, vector<8x4xf32>, vector<8x4xf32>, vector<8x4xf32>, vector<8x4xf32>, vector<8x4xf32> -> vector<8x32xf32>
    %154 = tpu.concatenate %136, %153 in 0 : vector<8x32xf32>, vector<8x32xf32> -> vector<16x32xf32>
    %c0_12 = arith.constant 0 : index
    %c0_13 = arith.constant 0 : index
    %155 = vector.load %arg4[%c0_12, %c0_13] : memref<32x32xf32, #tpu.memory_space<vmem>>, vector<32x32xf32>
    %cst_14 = arith.constant dense<0.000000e+00> : vector<16x32xf32>
    %156 = tpu.matmul %154, %155, %cst_14 {dimension_numbers = #tpu.dot_dimension_numbers<[1], [0], [0], [1], [0, 0, 1, 1], [], []>} : vector<16x32xf32>, vector<32x32xf32>, vector<16x32xf32> -> vector<16x32xf32>
    %c0_15 = arith.constant 0 : index
    %c0_16 = arith.constant 0 : index
    %157 = vector.load %arg5[%c0_15, %c0_16] : memref<1x32xf32, #tpu.memory_space<vmem>>, vector<1x32xf32>
    %158 = vector.broadcast %157 : vector<1x32xf32> to vector<16x32xf32>
    %159 = arith.addf %156, %158 : vector<16x32xf32>
    %c0_17 = arith.constant 0 : index
    %c0_18 = arith.constant 0 : index
    %160 = vector.load %arg6[%c0_17, %c0_18] : memref<16x32xf32, #tpu.memory_space<vmem>>, vector<16x32xf32>
    tpu.vector_store %arg6[%c0_17, %c0_18], %159 {strides = array<i32>} : memref<16x32xf32, #tpu.memory_space<vmem>>, vector<16x32xf32>,
    return
  }
  func.func @transform_0(%arg0: i32) -> (i32, i32) {
    %c0_i32 = arith.constant 0 : i32
    %c0_i32_0 = arith.constant 0 : i32
    return %arg0, %c0_i32 : i32, i32
  }
  func.func @transform_1(%arg0: i32) -> (i32, i32, i32) {
    %c0_i32 = arith.constant 0 : i32
    %c0_i32_0 = arith.constant 0 : i32
    %c0_i32_1 = arith.constant 0 : i32
    return %arg0, %c0_i32, %c0_i32_0 : i32, i32, i32
  }
  func.func @transform_2(%arg0: i32) -> (i32, i32) {
    %c0_i32 = arith.constant 0 : i32
    %c0_i32_0 = arith.constant 0 : i32
    %c0_i32_1 = arith.constant 0 : i32
    return %c0_i32, %c0_i32_0 : i32, i32
  }
  func.func @transform_3(%arg0: i32) -> (i32, i32) {
    %c0_i32 = arith.constant 0 : i32
    %c0_i32_0 = arith.constant 0 : i32
    %c0_i32_1 = arith.constant 0 : i32
    return %c0_i32, %c0_i32_0 : i32, i32
  }
  func.func @transform_4(%arg0: i32) -> (i32, i32) {
    %c0_i32 = arith.constant 0 : i32
    %c0_i32_0 = arith.constant 0 : i32
    %c0_i32_1 = arith.constant 0 : i32
    return %c0_i32, %c0_i32_0 : i32, i32
  }
  func.func @transform_5(%arg0: i32) -> (i32, i32) {
    %c0_i32 = arith.constant 0 : i32
    %c0_i32_0 = arith.constant 0 : i32
    return %arg0, %c0_i32 : i32, i32
  }
}

</mosaic_0001>

<llo_original>
// kernel: tpu_custom_call.1
$region0: #{tpu_custom_call.1}
  #allocation0 [shape = 'u32[]', space=smem, size = 0x4, offset = 0x4, fixed_abs, tag = 'smem constant byte address 0x4 - core index']
  #allocation1 [shape = 'u32[72,128]{1,0:T(1,128)}', space=vmem, size = 0x9000, scoped, tag = 'internal scratch']
  %s0 = inlined_call_operand.vmem [shape: f32[16,32], index: 0, kind: input, shape index: {}]
  %s1 = inlined_call_operand.vmem [shape: f32[16,1,8], index: 1, kind: input, shape index: {}]
  %s2 = inlined_call_operand.hbm [shape: f32[32,96], index: 2, kind: input, shape index: {}]
  %s3 = inlined_call_operand.hbm [shape: f32[32,32], index: 3, kind: input, shape index: {}]
  %s4 = inlined_call_operand.vmem [shape: f32[1,32], index: 4, kind: input, shape index: {}]
  %s5 = inlined_call_operand.hbm [shape: f32[16,32], index: 5, kind: output, shape index: {}]
  %s6 = sld [smem:[#allocation0]]
  $region38: #{tpu_custom_call.1} parent=0
    _
  %s8 = ssub.s32 1, %s6
  %s9 = scalar_select 0, %s8, %s6
  $region1: #{tpu_custom_call.1} parent=0
    #allocation2 [shape = 'u8[16384]{0}', space=vmem, size = 0x4000, scoped, tag = 'input window, operand 2, single buffered']
    #allocation3 [shape = 's32[1]{0}', space=sflag, size = 0x4, scoped, tag = 'scoped memory for tpu_custom_call.1']
    #allocation4 [shape = 's32[1]{0}', space=sflag, size = 0x4, scoped, tag = 'scoped memory for tpu_custom_call.1']
    #allocation5 [shape = 'u8[16384]{0}', space=vmem, size = 0x4000, scoped, tag = 'input window, operand 3, single buffered']
    #allocation6 [shape = 's32[1]{0}', space=sflag, size = 0x4, scoped, tag = 'scoped memory for tpu_custom_call.1']
    #allocation7 [shape = 'u8[8192]{0}', space=vmem, size = 0x2000, scoped, tag = 'output window, operand 0, single buffered']
    %10 = vsyncpa [#allocation3], 0
    %11 = vsyncpa [#allocation6], 0
    %12 = vsyncpa [#allocation4], 0
    // Predicated region
    $region2: #{tpu_custom_call.1} parent=1 // pred_check
      _
    $region3: #{tpu_custom_call.1} parent=1 // pred_check_branch
      %14 = sbr.rel (0) target = $region5
    $region4: #{tpu_custom_call.1} parent=1 // pred_region
      _
    $region5: #{tpu_custom_call.1} parent=1 // pred_fallthru
      _
    // Predicated region
    $region6: #{tpu_custom_call.1} parent=1 // pred_check
      _
    $region7: #{tpu_custom_call.1} parent=1 // pred_check_branch
      %16 = sbr.rel (0) target = $region9
    $region8: #{tpu_custom_call.1} parent=1 // pred_region
      _
    $region9: #{tpu_custom_call.1} parent=1 // pred_fallthru
      _
    // Predicated region
    $region10: #{tpu_custom_call.1} parent=1 // pred_check
      _
    $region11: #{tpu_custom_call.1} parent=1 // pred_check_branch
      %18 = sbr.rel (0) target = $region13
    $region12: #{tpu_custom_call.1} parent=1 // pred_region
      %20 = vsyncadd [#allocation3], 0
      %s21 = sshll.u32 %s2, 4
      %s22 = int_to_ptr.hbm [resolvable:$true] %s21
      %s23 = sshll.u32 [#allocation2], 4
      %s24 = int_to_ptr.vmem [resolvable:$true] %s23
      %29 = dma.hbm_to_vmem [thread:$0]  %s22, 512, %s24, [#allocation3], 128, 128, 8
    $region13: #{tpu_custom_call.1} parent=1 // pred_fallthru
      _
    // Predicated region
    $region14: #{tpu_custom_call.1} parent=1 // pred_check
      _
    $region15: #{tpu_custom_call.1} parent=1 // pred_check_branch
      %31 = sbr.rel (0) target = $region17
    $region16: #{tpu_custom_call.1} parent=1 // pred_region
      %33 = vsyncadd [#allocation6], 0
      %s34 = sshll.u32 %s3, 4
      %s35 = int_to_ptr.hbm [resolvable:$true] %s34
      %s36 = sshll.u32 [#allocation5], 4
      %s37 = int_to_ptr.vmem [resolvable:$true] %s36
      %42 = dma.hbm_to_vmem [thread:$0]  %s35, 512, %s37, [#allocation6], 128, 128, 8
    $region17: #{tpu_custom_call.1} parent=1 // pred_fallthru
      _
    // Predicated region
    $region18: #{tpu_custom_call.1} parent=1 // pred_check
      _
    $region19: #{tpu_custom_call.1} parent=1 // pred_check_branch
      %44 = sbr.rel (0) target = $region21
    $region20: #{tpu_custom_call.1} parent=1 // pred_region
      _
    $region21: #{tpu_custom_call.1} parent=1 // pred_fallthru
      _
    // Predicated region
    $region22: #{tpu_custom_call.1} parent=1 // pred_check
      _
    $region23: #{tpu_custom_call.1} parent=1 // pred_check_branch
      %46 = sbr.rel (0) target = $region25
    $region24: #{tpu_custom_call.1} parent=1 // pred_region
      %48 = dma.done [#allocation3], 512
    $region25: #{tpu_custom_call.1} parent=1 // pred_fallthru
      _
    // Predicated region
    $region26: #{tpu_custom_call.1} parent=1 // pred_check
      _
    $region27: #{tpu_custom_call.1} parent=1 // pred_check_branch
      %50 = sbr.rel (0) target = $region29
    $region28: #{tpu_custom_call.1} parent=1 // pred_region
      %52 = dma.done [#allocation6], 512
    $region29: #{tpu_custom_call.1} parent=1 // pred_fallthru
      _
    %v53 = vld [vmem:[%s0] sm:$0xff]
    %v54 = vld [vmem:[%s0 + $0x8] sm:$0xff]
    %v55 = vld [vmem:[#allocation2] sm:$0xff]
    %v56 = vld [vmem:[#allocation2 + $0x8] sm:$0xff]
    %v57 = vld [vmem:[#allocation2 + $0x10] sm:$0xff]
    %v58 = vld [vmem:[#allocation2 + $0x18] sm:$0xff]
    %vm59 = vcmask 261120
    %v61 = vsel %vm59, %v53, 0
    %v64 = vsel %vm59, %v54, 0
    %66 = vmatpush.msra.mxu0 0.0
    %67 = vmatpush.msra.mxu0 0.0
    %68 = vmatpush.msra.mxu0 0.0
    %69 = vmatpush.msra.mxu0 0.0
    %70 = vmatpush.msra.mxu0 0.0
    %71 = vmatpush.msra.mxu0 0.0
    %72 = vmatpush.msra.mxu0 0.0
    %73 = vmatpush.msra.mxu0 0.0
    %74 = vmatpush.msra.mxu0 0.0
    %75 = vmatpush.msra.mxu0 0.0
    %76 = vmatpush.msra.mxu0 0.0
    %77 = vmatpush.msra.mxu0 0.0
    %78 = vmatpush.msra.mxu0 %v58
    %79 = vmatpush.msra.mxu0 %v57
    %80 = vmatpush.msra.mxu0 %v56
    %81 = vmatpush.msra.mxu0 %v55
    %82 = vmatmul.f32.gmra.mxu0 %v61
    %v83 = vpop.f32.mrf.mxu0
    %v84 = vadd.f32 0.0, %v83
    %85 = vmatmul.f32.gmra.mxu0 %v64
    %v86 = vpop.f32.mrf.mxu0
    %v87 = vadd.f32 0.0, %v86
    %88 = vdwg.mxu0
    %90 = vrot.lane.b32.xlu0 %v84, 124
    %v91 = vpop.permute.xlu0 %90
    %92 = vrot.lane.b32.xlu0 %v84, 120
    %v93 = vpop.permute.xlu0 %92
    %94 = vrot.lane.b32.xlu0 %v84, 116
    %v95 = vpop.permute.xlu0 %94
    %96 = vrot.lane.b32.xlu0 %v84, 112
    %v97 = vpop.permute.xlu0 %96
    %98 = vrot.lane.b32.xlu0 %v84, 108
    %v99 = vpop.permute.xlu0 %98
    %100 = vrot.lane.b32.xlu0 %v84, 104
    %v101 = vpop.permute.xlu0 %100
    %102 = vrot.lane.b32.xlu0 %v84, 100
    %v103 = vpop.permute.xlu0 %102
    %105 = vrot.lane.b32.xlu0 %v87, 124
    %v106 = vpop.permute.xlu0 %105
    %107 = vrot.lane.b32.xlu0 %v87, 120
    %v108 = vpop.permute.xlu0 %107
    %109 = vrot.lane.b32.xlu0 %v87, 116
    %v110 = vpop.permute.xlu0 %109
    %111 = vrot.lane.b32.xlu0 %v87, 112
    %v112 = vpop.permute.xlu0 %111
    %113 = vrot.lane.b32.xlu0 %v87, 108
    %v114 = vpop.permute.xlu0 %113
    %115 = vrot.lane.b32.xlu0 %v87, 104
    %v116 = vpop.permute.xlu0 %115
    %117 = vrot.lane.b32.xlu0 %v87, 100
    %v118 = vpop.permute.xlu0 %117
    %119 = vrot.lane.b32.xlu0 %v84, 96
    %v120 = vpop.permute.xlu0 %119
    %vm121 = vcmask 31744
    %v122 = vsel %vm121, %v84, 0
    %v124 = vsel %vm121, %v120, 0
    %126 = vmatpush.xpose.msra.mxu0 0.0
    %127 = vmatpush.xpose.msra.mxu0 0.0
    %128 = vmatpush.xpose.msra.mxu0 0.0
    %129 = vmatpush.xpose.msra.mxu0 0.0
    %130 = vmatpush.xpose.msra.mxu0 0.0
    %131 = vmatpush.xpose.msra.mxu0 0.0
    %132 = vmatpush.xpose.msra.mxu0 0.0
    %133 = vmatpush.xpose.msra.mxu0 0.0
    %134 = vmatpush.xpose.msra.mxu0 0.0
    %135 = vmatpush.xpose.msra.mxu0 0.0
    %136 = vmatpush.xpose.msra.mxu0 0.0
    %137 = vmatpush.xpose.msra.mxu0 0.0
    %138 = vmatpush.xpose.msra.mxu0 0.0
    %139 = vmatpush.xpose.msra.mxu0 0.0
    %140 = vmatpush.xpose.msra.mxu0 0.0
    %141 = vmatpush.xpose.msra.mxu0 %v124
    %142 = vmatmul.f32.gmra.mxu0 %v122
    %v143 = vpop.f32.mrf.mxu0
    %v144 = vadd.f32 0.0, %v143
    %145 = vdwg.mxu0
    %146 = vrot.lane.b32.xlu0 %v91, 96
    %v147 = vpop.permute.xlu0 %146
    %v148 = vsel %vm121, %v91, 0
    %v150 = vsel %vm121, %v147, 0
    %152 = vmatpush.xpose.msra.mxu0 0.0
    %153 = vmatpush.xpose.msra.mxu0 0.0
    %154 = vmatpush.xpose.msra.mxu0 0.0
    %155 = vmatpush.xpose.msra.mxu0 0.0
    %156 = vmatpush.xpose.msra.mxu0 0.0
    %157 = vmatpush.xpose.msra.mxu0 0.0
    %158 = vmatpush.xpose.msra.mxu0 0.0
    %159 = vmatpush.xpose.msra.mxu0 0.0
    %160 = vmatpush.xpose.msra.mxu0 0.0
    %161 = vmatpush.xpose.msra.mxu0 0.0
    %162 = vmatpush.xpose.msra.mxu0 0.0
    %163 = vmatpush.xpose.msra.mxu0 0.0
    %164 = vmatpush.xpose.msra.mxu0 0.0
    %165 = vmatpush.xpose.msra.mxu0 0.0
    %166 = vmatpush.xpose.msra.mxu0 0.0
    %167 = vmatpush.xpose.msra.mxu0 %v150
    %168 = vmatmul.f32.gmra.mxu0 %v148
    %v169 = vpop.f32.mrf.mxu0
    %v170 = vadd.f32 0.0, %v169
    %171 = vdwg.mxu0
    %172 = vrot.lane.b32.xlu0 %v93, 96
    %v173 = vpop.permute.xlu0 %172
    %v174 = vsel %vm121, %v93, 0
    %v176 = vsel %vm121, %v173, 0
    %178 = vmatpush.xpose.msra.mxu0 0.0
    %179 = vmatpush.xpose.msra.mxu0 0.0
    %180 = vmatpush.xpose.msra.mxu0 0.0
    %181 = vmatpush.xpose.msra.mxu0 0.0
    %182 = vmatpush.xpose.msra.mxu0 0.0
    %183 = vmatpush.xpose.msra.mxu0 0.0
    %184 = vmatpush.xpose.msra.mxu0 0.0
    %185 = vmatpush.xpose.msra.mxu0 0.0
    %186 = vmatpush.xpose.msra.mxu0 0.0
    %187 = vmatpush.xpose.msra.mxu0 0.0
    %188 = vmatpush.xpose.msra.mxu0 0.0
    %189 = vmatpush.xpose.msra.mxu0 0.0
    %190 = vmatpush.xpose.msra.mxu0 0.0
    %191 = vmatpush.xpose.msra.mxu0 0.0
    %192 = vmatpush.xpose.msra.mxu0 0.0
    %193 = vmatpush.xpose.msra.mxu0 %v176
    %194 = vmatmul.f32.gmra.mxu0 %v174
    %v195 = vpop.f32.mrf.mxu0
    %v196 = vadd.f32 0.0, %v195
    %197 = vdwg.mxu0
    %198 = vrot.lane.b32.xlu0 %v95, 96
    %v199 = vpop.permute.xlu0 %198
    %v200 = vsel %vm121, %v95, 0
    %v202 = vsel %vm121, %v199, 0
    %204 = vmatpush.xpose.msra.mxu0 0.0
    %205 = vmatpush.xpose.msra.mxu0 0.0
    %206 = vmatpush.xpose.msra.mxu0 0.0
    %207 = vmatpush.xpose.msra.mxu0 0.0
    %208 = vmatpush.xpose.msra.mxu0 0.0
    %209 = vmatpush.xpose.msra.mxu0 0.0
    %210 = vmatpush.xpose.msra.mxu0 0.0
    %211 = vmatpush.xpose.msra.mxu0 0.0
    %212 = vmatpush.xpose.msra.mxu0 0.0
    %213 = vmatpush.xpose.msra.mxu0 0.0
    %214 = vmatpush.xpose.msra.mxu0 0.0
    %215 = vmatpush.xpose.msra.mxu0 0.0
    %216 = vmatpush.xpose.msra.mxu0 0.0
    %217 = vmatpush.xpose.msra.mxu0 0.0
    %218 = vmatpush.xpose.msra.mxu0 0.0
    %219 = vmatpush.xpose.msra.mxu0 %v202
    %220 = vmatmul.f32.gmra.mxu0 %v200
    %v221 = vpop.f32.mrf.mxu0
    %v222 = vadd.f32 0.0, %v221
    %223 = vdwg.mxu0
    %224 = vrot.lane.b32.xlu0 %v97, 96
    %v225 = vpop.permute.xlu0 %224
    %v226 = vsel %vm121, %v97, 0
    %v228 = vsel %vm121, %v225, 0
    %230 = vmatpush.xpose.msra.mxu0 0.0
    %231 = vmatpush.xpose.msra.mxu0 0.0
    %232 = vmatpush.xpose.msra.mxu0 0.0
    %233 = vmatpush.xpose.msra.mxu0 0.0
    %234 = vmatpush.xpose.msra.mxu0 0.0
    %235 = vmatpush.xpose.msra.mxu0 0.0
    %236 = vmatpush.xpose.msra.mxu0 0.0
    %237 = vmatpush.xpose.msra.mxu0 0.0
    %238 = vmatpush.xpose.msra.mxu0 0.0
    %239 = vmatpush.xpose.msra.mxu0 0.0
    %240 = vmatpush.xpose.msra.mxu0 0.0
    %241 = vmatpush.xpose.msra.mxu0 0.0
    %242 = vmatpush.xpose.msra.mxu0 0.0
    %243 = vmatpush.xpose.msra.mxu0 0.0
    %244 = vmatpush.xpose.msra.mxu0 0.0
    %245 = vmatpush.xpose.msra.mxu0 %v228
    %246 = vmatmul.f32.gmra.mxu0 %v226
    %v247 = vpop.f32.mrf.mxu0
    %v248 = vadd.f32 0.0, %v247
    %249 = vdwg.mxu0
    %250 = vrot.lane.b32.xlu0 %v99, 96
    %v251 = vpop.permute.xlu0 %250
    %v252 = vsel %vm121, %v99, 0
    %v254 = vsel %vm121, %v251, 0
    %256 = vmatpush.xpose.msra.mxu0 0.0
    %257 = vmatpush.xpose.msra.mxu0 0.0
    %258 = vmatpush.xpose.msra.mxu0 0.0
    %259 = vmatpush.xpose.msra.mxu0 0.0
    %260 = vmatpush.xpose.msra.mxu0 0.0
    %261 = vmatpush.xpose.msra.mxu0 0.0
    %262 = vmatpush.xpose.msra.mxu0 0.0
    %263 = vmatpush.xpose.msra.mxu0 0.0
    %264 = vmatpush.xpose.msra.mxu0 0.0
    %265 = vmatpush.xpose.msra.mxu0 0.0
    %266 = vmatpush.xpose.msra.mxu0 0.0
    %267 = vmatpush.xpose.msra.mxu0 0.0
    %268 = vmatpush.xpose.msra.mxu0 0.0
    %269 = vmatpush.xpose.msra.mxu0 0.0
    %270 = vmatpush.xpose.msra.mxu0 0.0
    %271 = vmatpush.xpose.msra.mxu0 %v254
    %272 = vmatmul.f32.gmra.mxu0 %v252
    %v273 = vpop.f32.mrf.mxu0
    %v274 = vadd.f32 0.0, %v273
    %275 = vdwg.mxu0
    %276 = vrot.lane.b32.xlu0 %v101, 96
    %v277 = vpop.permute.xlu0 %276
    %v278 = vsel %vm121, %v101, 0
    %v280 = vsel %vm121, %v277, 0
    %282 = vmatpush.xpose.msra.mxu0 0.0
    %283 = vmatpush.xpose.msra.mxu0 0.0
    %284 = vmatpush.xpose.msra.mxu0 0.0
    %285 = vmatpush.xpose.msra.mxu0 0.0
    %286 = vmatpush.xpose.msra.mxu0 0.0
    %287 = vmatpush.xpose.msra.mxu0 0.0
    %288 = vmatpush.xpose.msra.mxu0 0.0
    %289 = vmatpush.xpose.msra.mxu0 0.0
    %290 = vmatpush.xpose.msra.mxu0 0.0
    %291 = vmatpush.xpose.msra.mxu0 0.0
    %292 = vmatpush.xpose.msra.mxu0 0.0
    %293 = vmatpush.xpose.msra.mxu0 0.0
    %294 = vmatpush.xpose.msra.mxu0 0.0
    %295 = vmatpush.xpose.msra.mxu0 0.0
    %296 = vmatpush.xpose.msra.mxu0 0.0
    %297 = vmatpush.xpose.msra.mxu0 %v280
    %298 = vmatmul.f32.gmra.mxu0 %v278
    %v299 = vpop.f32.mrf.mxu0
    %v300 = vadd.f32 0.0, %v299
    %301 = vdwg.mxu0
    %302 = vrot.lane.b32.xlu0 %v103, 96
    %v303 = vpop.permute.xlu0 %302
    %v304 = vsel %vm121, %v103, 0
    %v306 = vsel %vm121, %v303, 0
    %308 = vmatpush.xpose.msra.mxu0 0.0
    %309 = vmatpush.xpose.msra.mxu0 0.0
    %310 = vmatpush.xpose.msra.mxu0 0.0
    %311 = vmatpush.xpose.msra.mxu0 0.0
    %312 = vmatpush.xpose.msra.mxu0 0.0
    %313 = vmatpush.xpose.msra.mxu0 0.0
    %314 = vmatpush.xpose.msra.mxu0 0.0
    %315 = vmatpush.xpose.msra.mxu0 0.0
    %316 = vmatpush.xpose.msra.mxu0 0.0
    %317 = vmatpush.xpose.msra.mxu0 0.0
    %318 = vmatpush.xpose.msra.mxu0 0.0
    %319 = vmatpush.xpose.msra.mxu0 0.0
    %320 = vmatpush.xpose.msra.mxu0 0.0
    %321 = vmatpush.xpose.msra.mxu0 0.0
    %322 = vmatpush.xpose.msra.mxu0 0.0
    %323 = vmatpush.xpose.msra.mxu0 %v306
    %324 = vmatmul.f32.gmra.mxu0 %v304
    %v325 = vpop.f32.mrf.mxu0
    %v326 = vadd.f32 0.0, %v325
    %327 = vdwg.mxu0
    %328 = vrot.lane.b32.xlu0 %v87, 96
    %v329 = vpop.permute.xlu0 %328
    %v330 = vsel %vm121, %v87, 0
    %v332 = vsel %vm121, %v329, 0
    %334 = vmatpush.xpose.msra.mxu0 0.0
    %335 = vmatpush.xpose.msra.mxu0 0.0
    %336 = vmatpush.xpose.msra.mxu0 0.0
    %337 = vmatpush.xpose.msra.mxu0 0.0
    %338 = vmatpush.xpose.msra.mxu0 0.0
    %339 = vmatpush.xpose.msra.mxu0 0.0
    %340 = vmatpush.xpose.msra.mxu0 0.0
    %341 = vmatpush.xpose.msra.mxu0 0.0
    %342 = vmatpush.xpose.msra.mxu0 0.0
    %343 = vmatpush.xpose.msra.mxu0 0.0
    %344 = vmatpush.xpose.msra.mxu0 0.0
    %345 = vmatpush.xpose.msra.mxu0 0.0
    %346 = vmatpush.xpose.msra.mxu0 0.0
    %347 = vmatpush.xpose.msra.mxu0 0.0
    %348 = vmatpush.xpose.msra.mxu0 0.0
    %349 = vmatpush.xpose.msra.mxu0 %v332
    %350 = vmatmul.f32.gmra.mxu0 %v330
    %v351 = vpop.f32.mrf.mxu0
    %v352 = vadd.f32 0.0, %v351
    %353 = vdwg.mxu0
    %354 = vrot.lane.b32.xlu0 %v106, 96
    %v355 = vpop.permute.xlu0 %354
    %v356 = vsel %vm121, %v106, 0
    %v358 = vsel %vm121, %v355, 0
    %360 = vmatpush.xpose.msra.mxu0 0.0
    %361 = vmatpush.xpose.msra.mxu0 0.0
    %362 = vmatpush.xpose.msra.mxu0 0.0
    %363 = vmatpush.xpose.msra.mxu0 0.0
    %364 = vmatpush.xpose.msra.mxu0 0.0
    %365 = vmatpush.xpose.msra.mxu0 0.0
    %366 = vmatpush.xpose.msra.mxu0 0.0
    %367 = vmatpush.xpose.msra.mxu0 0.0
    %368 = vmatpush.xpose.msra.mxu0 0.0
    %369 = vmatpush.xpose.msra.mxu0 0.0
    %370 = vmatpush.xpose.msra.mxu0 0.0
    %371 = vmatpush.xpose.msra.mxu0 0.0
    %372 = vmatpush.xpose.msra.mxu0 0.0
    %373 = vmatpush.xpose.msra.mxu0 0.0
    %374 = vmatpush.xpose.msra.mxu0 0.0
    %375 = vmatpush.xpose.msra.mxu0 %v358
    %376 = vmatmul.f32.gmra.mxu0 %v356
    %v377 = vpop.f32.mrf.mxu0
    %v378 = vadd.f32 0.0, %v377
    %379 = vdwg.mxu0
    %380 = vrot.lane.b32.xlu0 %v108, 96
    %v381 = vpop.permute.xlu0 %380
    %v382 = vsel %vm121, %v108, 0
    %v384 = vsel %vm121, %v381, 0
    %386 = vmatpush.xpose.msra.mxu0 0.0
    %387 = vmatpush.xpose.msra.mxu0 0.0
    %388 = vmatpush.xpose.msra.mxu0 0.0
    %389 = vmatpush.xpose.msra.mxu0 0.0
    %390 = vmatpush.xpose.msra.mxu0 0.0
    %391 = vmatpush.xpose.msra.mxu0 0.0
    %392 = vmatpush.xpose.msra.mxu0 0.0
    %393 = vmatpush.xpose.msra.mxu0 0.0
    %394 = vmatpush.xpose.msra.mxu0 0.0
    %395 = vmatpush.xpose.msra.mxu0 0.0
    %396 = vmatpush.xpose.msra.mxu0 0.0
    %397 = vmatpush.xpose.msra.mxu0 0.0
    %398 = vmatpush.xpose.msra.mxu0 0.0
    %399 = vmatpush.xpose.msra.mxu0 0.0
    %400 = vmatpush.xpose.msra.mxu0 0.0
    %401 = vmatpush.xpose.msra.mxu0 %v384
    %402 = vmatmul.f32.gmra.mxu0 %v382
    %v403 = vpop.f32.mrf.mxu0
    %v404 = vadd.f32 0.0, %v403
    %405 = vdwg.mxu0
    %406 = vrot.lane.b32.xlu0 %v110, 96
    %v407 = vpop.permute.xlu0 %406
    %v408 = vsel %vm121, %v110, 0
    %v410 = vsel %vm121, %v407, 0
    %412 = vmatpush.xpose.msra.mxu0 0.0
    %413 = vmatpush.xpose.msra.mxu0 0.0
    %414 = vmatpush.xpose.msra.mxu0 0.0
    %415 = vmatpush.xpose.msra.mxu0 0.0
    %416 = vmatpush.xpose.msra.mxu0 0.0
    %417 = vmatpush.xpose.msra.mxu0 0.0
    %418 = vmatpush.xpose.msra.mxu0 0.0
    %419 = vmatpush.xpose.msra.mxu0 0.0
    %420 = vmatpush.xpose.msra.mxu0 0.0
    %421 = vmatpush.xpose.msra.mxu0 0.0
    %422 = vmatpush.xpose.msra.mxu0 0.0
    %423 = vmatpush.xpose.msra.mxu0 0.0
    %424 = vmatpush.xpose.msra.mxu0 0.0
    %425 = vmatpush.xpose.msra.mxu0 0.0
    %426 = vmatpush.xpose.msra.mxu0 0.0
    %427 = vmatpush.xpose.msra.mxu0 %v410
    %428 = vmatmul.f32.gmra.mxu0 %v408
    %v429 = vpop.f32.mrf.mxu0
    %v430 = vadd.f32 0.0, %v429
    %431 = vdwg.mxu0
    %432 = vrot.lane.b32.xlu0 %v112, 96
    %v433 = vpop.permute.xlu0 %432
    %v434 = vsel %vm121, %v112, 0
    %v436 = vsel %vm121, %v433, 0
    %438 = vmatpush.xpose.msra.mxu0 0.0
    %439 = vmatpush.xpose.msra.mxu0 0.0
    %440 = vmatpush.xpose.msra.mxu0 0.0
    %441 = vmatpush.xpose.msra.mxu0 0.0
    %442 = vmatpush.xpose.msra.mxu0 0.0
    %443 = vmatpush.xpose.msra.mxu0 0.0
    %444 = vmatpush.xpose.msra.mxu0 0.0
    %445 = vmatpush.xpose.msra.mxu0 0.0
    %446 = vmatpush.xpose.msra.mxu0 0.0
    %447 = vmatpush.xpose.msra.mxu0 0.0
    %448 = vmatpush.xpose.msra.mxu0 0.0
    %449 = vmatpush.xpose.msra.mxu0 0.0
    %450 = vmatpush.xpose.msra.mxu0 0.0
    %451 = vmatpush.xpose.msra.mxu0 0.0
    %452 = vmatpush.xpose.msra.mxu0 0.0
    %453 = vmatpush.xpose.msra.mxu0 %v436
    %454 = vmatmul.f32.gmra.mxu0 %v434
    %v455 = vpop.f32.mrf.mxu0
    %v456 = vadd.f32 0.0, %v455
    %457 = vdwg.mxu0
    %458 = vrot.lane.b32.xlu0 %v114, 96
    %v459 = vpop.permute.xlu0 %458
    %v460 = vsel %vm121, %v114, 0
    %v462 = vsel %vm121, %v459, 0
    %464 = vmatpush.xpose.msra.mxu0 0.0
    %465 = vmatpush.xpose.msra.mxu0 0.0
    %466 = vmatpush.xpose.msra.mxu0 0.0
    %467 = vmatpush.xpose.msra.mxu0 0.0
    %468 = vmatpush.xpose.msra.mxu0 0.0
    %469 = vmatpush.xpose.msra.mxu0 0.0
    %470 = vmatpush.xpose.msra.mxu0 0.0
    %471 = vmatpush.xpose.msra.mxu0 0.0
    %472 = vmatpush.xpose.msra.mxu0 0.0
    %473 = vmatpush.xpose.msra.mxu0 0.0
    %474 = vmatpush.xpose.msra.mxu0 0.0
    %475 = vmatpush.xpose.msra.mxu0 0.0
    %476 = vmatpush.xpose.msra.mxu0 0.0
    %477 = vmatpush.xpose.msra.mxu0 0.0
    %478 = vmatpush.xpose.msra.mxu0 0.0
    %479 = vmatpush.xpose.msra.mxu0 %v462
    %480 = vmatmul.f32.gmra.mxu0 %v460
    %v481 = vpop.f32.mrf.mxu0
    %v482 = vadd.f32 0.0, %v481
    %483 = vdwg.mxu0
    %484 = vrot.lane.b32.xlu0 %v116, 96
    %v485 = vpop.permute.xlu0 %484
    %v486 = vsel %vm121, %v116, 0
    %v488 = vsel %vm121, %v485, 0
    %490 = vmatpush.xpose.msra.mxu0 0.0
    %491 = vmatpush.xpose.msra.mxu0 0.0
    %492 = vmatpush.xpose.msra.mxu0 0.0
    %493 = vmatpush.xpose.msra.mxu0 0.0
    %494 = vmatpush.xpose.msra.mxu0 0.0
    %495 = vmatpush.xpose.msra.mxu0 0.0
    %496 = vmatpush.xpose.msra.mxu0 0.0
    %497 = vmatpush.xpose.msra.mxu0 0.0
    %498 = vmatpush.xpose.msra.mxu0 0.0
    %499 = vmatpush.xpose.msra.mxu0 0.0
    %500 = vmatpush.xpose.msra.mxu0 0.0
    %501 = vmatpush.xpose.msra.mxu0 0.0
    %502 = vmatpush.xpose.msra.mxu0 0.0
    %503 = vmatpush.xpose.msra.mxu0 0.0
    %504 = vmatpush.xpose.msra.mxu0 0.0
    %505 = vmatpush.xpose.msra.mxu0 %v488
    %506 = vmatmul.f32.gmra.mxu0 %v486
    %v507 = vpop.f32.mrf.mxu0
    %v508 = vadd.f32 0.0, %v507
    %509 = vdwg.mxu0
    %510 = vrot.lane.b32.xlu0 %v118, 96
    %v511 = vpop.permute.xlu0 %510
    %v512 = vsel %vm121, %v118, 0
    %v514 = vsel %vm121, %v511, 0
    %516 = vmatpush.xpose.msra.mxu0 0.0
    %517 = vmatpush.xpose.msra.mxu0 0.0
    %518 = vmatpush.xpose.msra.mxu0 0.0
    %519 = vmatpush.xpose.msra.mxu0 0.0
    %520 = vmatpush.xpose.msra.mxu0 0.0
    %521 = vmatpush.xpose.msra.mxu0 0.0
    %522 = vmatpush.xpose.msra.mxu0 0.0
    %523 = vmatpush.xpose.msra.mxu0 0.0
    %524 = vmatpush.xpose.msra.mxu0 0.0
    %525 = vmatpush.xpose.msra.mxu0 0.0
    %526 = vmatpush.xpose.msra.mxu0 0.0
    %527 = vmatpush.xpose.msra.mxu0 0.0
    %528 = vmatpush.xpose.msra.mxu0 0.0
    %529 = vmatpush.xpose.msra.mxu0 0.0
    %530 = vmatpush.xpose.msra.mxu0 0.0
    %531 = vmatpush.xpose.msra.mxu0 %v514
    %532 = vmatmul.f32.gmra.mxu0 %v512
    %v533 = vpop.f32.mrf.mxu0
    %v534 = vadd.f32 0.0, %v533
    %535 = vdwg.mxu0
    %v536 = vld [vmem:[%s1] sm:$0x1]
    %v537 = vld [vmem:[%s1 + $0x1] sm:$0x1]
    %v538 = vld [vmem:[%s1 + $0x2] sm:$0x1]
    %v539 = vld [vmem:[%s1 + $0x3] sm:$0x1]
    %v540 = vld [vmem:[%s1 + $0x4] sm:$0x1]
    %v541 = vld [vmem:[%s1 + $0x5] sm:$0x1]
    %v542 = vld [vmem:[%s1 + $0x6] sm:$0x1]
    %v543 = vld [vmem:[%s1 + $0x7] sm:$0x1]
    %v544 = vld [vmem:[%s1 + $0x8] sm:$0x1]
    %v545 = vld [vmem:[%s1 + $0x9] sm:$0x1]
    %v546 = vld [vmem:[%s1 + $0xa] sm:$0x1]
    %v547 = vld [vmem:[%s1 + $0xb] sm:$0x1]
    %v548 = vld [vmem:[%s1 + $0xc] sm:$0x1]
    %v549 = vld [vmem:[%s1 + $0xd] sm:$0x1]
    %v550 = vld [vmem:[%s1 + $0xe] sm:$0x1]
    %v551 = vld [vmem:[%s1 + $0xf] sm:$0x1]
    %vm552 = vcmp.gt.f32.partialorder %v536, 0.0
    %vm553 = vcmp.gt.f32.partialorder %v537, 0.0
    %vm554 = vcmp.gt.f32.partialorder %v538, 0.0
    %vm555 = vcmp.gt.f32.partialorder %v539, 0.0
    %vm556 = vcmp.gt.f32.partialorder %v540, 0.0
    %vm557 = vcmp.gt.f32.partialorder %v541, 0.0
    %vm558 = vcmp.gt.f32.partialorder %v542, 0.0
    %vm559 = vcmp.gt.f32.partialorder %v543, 0.0
    %vm560 = vcmp.gt.f32.partialorder %v544, 0.0
    %vm561 = vcmp.gt.f32.partialorder %v545, 0.0
    %vm562 = vcmp.gt.f32.partialorder %v546, 0.0
    %vm563 = vcmp.gt.f32.partialorder %v547, 0.0
    %vm564 = vcmp.gt.f32.partialorder %v548, 0.0
    %vm565 = vcmp.gt.f32.partialorder %v549, 0.0
    %vm566 = vcmp.gt.f32.partialorder %v550, 0.0
    %vm567 = vcmp.gt.f32.partialorder %v551, 0.0
    %v568 = vsel %vm552, 1, 0
    %v569 = vsel %vm553, 1, 0
    %v570 = vsel %vm554, 1, 0
    %v571 = vsel %vm555, 1, 0
    %v572 = vsel %vm556, 1, 0
    %v573 = vsel %vm557, 1, 0
    %v574 = vsel %vm558, 1, 0
    %v575 = vsel %vm559, 1, 0
    %v576 = vsel %vm560, 1, 0
    %v577 = vsel %vm561, 1, 0
    %v578 = vsel %vm562, 1, 0
    %v579 = vsel %vm563, 1, 0
    %v580 = vsel %vm564, 1, 0
    %v581 = vsel %vm565, 1, 0
    %v582 = vsel %vm566, 1, 0
    %v583 = vsel %vm567, 1, 0
    %v584 = vperm.slane %v568, 0
    %v585 = vperm.slane %v569, 0
    %v586 = vperm.slane %v570, 0
    %v587 = vperm.slane %v571, 0
    %v588 = vperm.slane %v572, 0
    %v589 = vperm.slane %v573, 0
    %v590 = vperm.slane %v574, 0
    %v591 = vperm.slane %v575, 0
    %v592 = vperm.slane %v576, 0
    %v593 = vperm.slane %v577, 0
    %v594 = vperm.slane %v578, 0
    %v595 = vperm.slane %v579, 0
    %v596 = vperm.slane %v580, 0
    %v597 = vperm.slane %v581, 0
    %v598 = vperm.slane %v582, 0
    %v599 = vperm.slane %v583, 0
    %vm600 = vcmp.eq.s32.totalorder %v584, 1
    %vm601 = vcmp.eq.s32.totalorder %v585, 1
    %vm602 = vcmp.eq.s32.totalorder %v586, 1
    %vm603 = vcmp.eq.s32.totalorder %v587, 1
    %vm604 = vcmp.eq.s32.totalorder %v588, 1
    %vm605 = vcmp.eq.s32.totalorder %v589, 1
    %vm606 = vcmp.eq.s32.totalorder %v590, 1
    %vm607 = vcmp.eq.s32.totalorder %v591, 1
    %vm608 = vcmp.eq.s32.totalorder %v592, 1
    %vm609 = vcmp.eq.s32.totalorder %v593, 1
    %vm610 = vcmp.eq.s32.totalorder %v594, 1
    %vm611 = vcmp.eq.s32.totalorder %v595, 1
    %vm612 = vcmp.eq.s32.totalorder %v596, 1
    %vm613 = vcmp.eq.s32.totalorder %v597, 1
    %vm614 = vcmp.eq.s32.totalorder %v598, 1
    %vm615 = vcmp.eq.s32.totalorder %v599, 1
    %v616 = vsel %vm600, -3.4028235e+38, %v144
    %v617 = vsel %vm601, -3.4028235e+38, %v170
    %v618 = vsel %vm602, -3.4028235e+38, %v196
    %v619 = vsel %vm603, -3.4028235e+38, %v222
    %v620 = vsel %vm604, -3.4028235e+38, %v248
    %v621 = vsel %vm605, -3.4028235e+38, %v274
    %v622 = vsel %vm606, -3.4028235e+38, %v300
    %v623 = vsel %vm607, -3.4028235e+38, %v326
    %v624 = vsel %vm608, -3.4028235e+38, %v352
    %v625 = vsel %vm609, -3.4028235e+38, %v378
    %v626 = vsel %vm610, -3.4028235e+38, %v404
    %v627 = vsel %vm611, -3.4028235e+38, %v430
    %v628 = vsel %vm612, -3.4028235e+38, %v456
    %v629 = vsel %vm613, -3.4028235e+38, %v482
    %v630 = vsel %vm614, -3.4028235e+38, %v508
    %v631 = vsel %vm615, -3.4028235e+38, %v534
    %vm632 = vcmask 64512
    %v633 = vsel %vm632, %v616, -inf
    %634 = vmax.xlane.f32.xlu0 %v633
    %v635 = vpop.xlane.xlu0 %634
    %v636 = vsel %vm632, %v617, -inf
    %637 = vmax.xlane.f32.xlu0 %v636
    %v638 = vpop.xlane.xlu0 %637
    %v639 = vsel %vm632, %v618, -inf
    %640 = vmax.xlane.f32.xlu0 %v639
    %v641 = vpop.xlane.xlu0 %640
    %v642 = vsel %vm632, %v619, -inf
    %643 = vmax.xlane.f32.xlu0 %v642
    %v644 = vpop.xlane.xlu0 %643
    %v645 = vsel %vm632, %v620, -inf
    %646 = vmax.xlane.f32.xlu0 %v645
    %v647 = vpop.xlane.xlu0 %646
    %v648 = vsel %vm632, %v621, -inf
    %649 = vmax.xlane.f32.xlu0 %v648
    %v650 = vpop.xlane.xlu0 %649
    %v651 = vsel %vm632, %v622, -inf
    %652 = vmax.xlane.f32.xlu0 %v651
    %v653 = vpop.xlane.xlu0 %652
    %v654 = vsel %vm632, %v623, -inf
    %655 = vmax.xlane.f32.xlu0 %v654
    %v656 = vpop.xlane.xlu0 %655
    %v657 = vsel %vm632, %v624, -inf
    %658 = vmax.xlane.f32.xlu0 %v657
    %v659 = vpop.xlane.xlu0 %658
    %v660 = vsel %vm632, %v625, -inf
    %661 = vmax.xlane.f32.xlu0 %v660
    %v662 = vpop.xlane.xlu0 %661
    %v663 = vsel %vm632, %v626, -inf
    %664 = vmax.xlane.f32.xlu0 %v663
    %v665 = vpop.xlane.xlu0 %664
    %v666 = vsel %vm632, %v627, -inf
    %667 = vmax.xlane.f32.xlu0 %v666
    %v668 = vpop.xlane.xlu0 %667
    %v669 = vsel %vm632, %v628, -inf
    %670 = vmax.xlane.f32.xlu0 %v669
    %v671 = vpop.xlane.xlu0 %670
    %v672 = vsel %vm632, %v629, -inf
    %673 = vmax.xlane.f32.xlu0 %v672
    %v674 = vpop.xlane.xlu0 %673
    %v675 = vsel %vm632, %v630, -inf
    %676 = vmax.xlane.f32.xlu0 %v675
    %v677 = vpop.xlane.xlu0 %676
    %v678 = vsel %vm632, %v631, -inf
    %679 = vmax.xlane.f32.xlu0 %v678
    %v680 = vpop.xlane.xlu0 %679
    %v681 = vsub.f32 %v616, %v635
    %v682 = vsub.f32 %v617, %v638
    %v683 = vsub.f32 %v618, %v641
    %v684 = vsub.f32 %v619, %v644
    %v685 = vsub.f32 %v620, %v647
    %v686 = vsub.f32 %v621, %v650
    %v687 = vsub.f32 %v622, %v653
    %v688 = vsub.f32 %v623, %v656
    %v689 = vsub.f32 %v624, %v659
    %v690 = vsub.f32 %v625, %v662
    %v691 = vsub.f32 %v626, %v665
    %v692 = vsub.f32 %v627, %v668
    %v693 = vsub.f32 %v628, %v671
    %v694 = vsub.f32 %v629, %v674
    %v695 = vsub.f32 %v630, %v677
    %v696 = vsub.f32 %v631, %v680
    %v697 = vmul.f32 %v681, 1.442695
    %v698 = vpow.pop %v697
    %v699 = vmul.f32 %v682, 1.442695
    %v700 = vpow.pop %v699
    %v701 = vmul.f32 %v683, 1.442695
    %v702 = vpow.pop %v701
    %v703 = vmul.f32 %v684, 1.442695
    %v704 = vpow.pop %v703
    %v705 = vmul.f32 %v685, 1.442695
    %v706 = vpow.pop %v705
    %v707 = vmul.f32 %v686, 1.442695
    %v708 = vpow.pop %v707
    %v709 = vmul.f32 %v687, 1.442695
    %v710 = vpow.pop %v709
    %v711 = vmul.f32 %v688, 1.442695
    %v712 = vpow.pop %v711
    %v713 = vmul.f32 %v689, 1.442695
    %v714 = vpow.pop %v713
    %v715 = vmul.f32 %v690, 1.442695
    %v716 = vpow.pop %v715
    %v717 = vmul.f32 %v691, 1.442695
    %v718 = vpow.pop %v717
    %v719 = vmul.f32 %v692, 1.442695
    %v720 = vpow.pop %v719
    %v721 = vmul.f32 %v693, 1.442695
    %v722 = vpow.pop %v721
    %v723 = vmul.f32 %v694, 1.442695
    %v724 = vpow.pop %v723
    %v725 = vmul.f32 %v695, 1.442695
    %v726 = vpow.pop %v725
    %v727 = vmul.f32 %v696, 1.442695
    %v728 = vpow.pop %v727
    %v729 = vsel %vm632, %v698, 0.0
    %730 = vadd.xlane.f32.xlu0 %v729
    %v731 = vpop.xlane.xlu0 %730
    %v732 = vsel %vm632, %v700, 0.0
    %733 = vadd.xlane.f32.xlu0 %v732
    %v734 = vpop.xlane.xlu0 %733
    %v735 = vsel %vm632, %v702, 0.0
    %736 = vadd.xlane.f32.xlu0 %v735
    %v737 = vpop.xlane.xlu0 %736
    %v738 = vsel %vm632, %v704, 0.0
    %739 = vadd.xlane.f32.xlu0 %v738
    %v740 = vpop.xlane.xlu0 %739
    %v741 = vsel %vm632, %v706, 0.0
    %742 = vadd.xlane.f32.xlu0 %v741
    %v743 = vpop.xlane.xlu0 %742
    %v744 = vsel %vm632, %v708, 0.0
    %745 = vadd.xlane.f32.xlu0 %v744
    %v746 = vpop.xlane.xlu0 %745
    %v747 = vsel %vm632, %v710, 0.0
    %748 = vadd.xlane.f32.xlu0 %v747
    %v749 = vpop.xlane.xlu0 %748
    %v750 = vsel %vm632, %v712, 0.0
    %751 = vadd.xlane.f32.xlu0 %v750
    %v752 = vpop.xlane.xlu0 %751
    %v753 = vsel %vm632, %v714, 0.0
    %754 = vadd.xlane.f32.xlu0 %v753
    %v755 = vpop.xlane.xlu0 %754
    %v756 = vsel %vm632, %v716, 0.0
    %757 = vadd.xlane.f32.xlu0 %v756
    %v758 = vpop.xlane.xlu0 %757
    %v759 = vsel %vm632, %v718, 0.0
    %760 = vadd.xlane.f32.xlu0 %v759
    %v761 = vpop.xlane.xlu0 %760
    %v762 = vsel %vm632, %v720, 0.0
    %763 = vadd.xlane.f32.xlu0 %v762
    %v764 = vpop.xlane.xlu0 %763
    %v765 = vsel %vm632, %v722, 0.0
    %766 = vadd.xlane.f32.xlu0 %v765
    %v767 = vpop.xlane.xlu0 %766
    %v768 = vsel %vm632, %v724, 0.0
    %769 = vadd.xlane.f32.xlu0 %v768
    %v770 = vpop.xlane.xlu0 %769
    %v771 = vsel %vm632, %v726, 0.0
    %772 = vadd.xlane.f32.xlu0 %v771
    %v773 = vpop.xlane.xlu0 %772
    %v774 = vsel %vm632, %v728, 0.0
    %775 = vadd.xlane.f32.xlu0 %v774
    %v776 = vpop.xlane.xlu0 %775
    %777 = vrot.lane.b32.xlu0 %v84, 64
    %v778 = vpop.permute.xlu0 %777
    %v781 = vsel %vm632, %v698, 0
    %783 = vmatpush.msra.mxu0 0.0
    %784 = vmatpush.msra.mxu0 0.0
    %785 = vmatpush.msra.mxu0 0.0
    %786 = vmatpush.msra.mxu0 0.0
    %787 = vmatpush.msra.mxu0 0.0
    %788 = vmatpush.msra.mxu0 0.0
    %789 = vmatpush.msra.mxu0 0.0
    %790 = vmatpush.msra.mxu0 0.0
    %791 = vmatpush.msra.mxu0 0.0
    %792 = vmatpush.msra.mxu0 0.0
    %793 = vmatpush.msra.mxu0 0.0
    %794 = vmatpush.msra.mxu0 0.0
    %795 = vmatpush.msra.mxu0 0.0
    %796 = vmatpush.msra.mxu0 0.0
    %797 = vmatpush.msra.mxu0 0.0
    %798 = vmatpush.msra.mxu0 %v778
    %799 = vmatmul.f32.gmra.mxu0 %v781
    %v800 = vpop.f32.mrf.mxu0
    %v801 = vadd.f32 0.0, %v800
    %802 = vdwg.mxu0
    %803 = vrot.lane.b32.xlu0 %v91, 64
    %v804 = vpop.permute.xlu0 %803
    %v807 = vsel %vm632, %v700, 0
    %809 = vmatpush.msra.mxu0 0.0
    %810 = vmatpush.msra.mxu0 0.0
    %811 = vmatpush.msra.mxu0 0.0
    %812 = vmatpush.msra.mxu0 0.0
    %813 = vmatpush.msra.mxu0 0.0
    %814 = vmatpush.msra.mxu0 0.0
    %815 = vmatpush.msra.mxu0 0.0
    %816 = vmatpush.msra.mxu0 0.0
    %817 = vmatpush.msra.mxu0 0.0
    %818 = vmatpush.msra.mxu0 0.0
    %819 = vmatpush.msra.mxu0 0.0
    %820 = vmatpush.msra.mxu0 0.0
    %821 = vmatpush.msra.mxu0 0.0
    %822 = vmatpush.msra.mxu0 0.0
    %823 = vmatpush.msra.mxu0 0.0
    %824 = vmatpush.msra.mxu0 %v804
    %825 = vmatmul.f32.gmra.mxu0 %v807
    %v826 = vpop.f32.mrf.mxu0
    %v827 = vadd.f32 0.0, %v826
    %828 = vdwg.mxu0
    %829 = vrot.lane.b32.xlu0 %v93, 64
    %v830 = vpop.permute.xlu0 %829
    %v833 = vsel %vm632, %v702, 0
    %835 = vmatpush.msra.mxu0 0.0
    %836 = vmatpush.msra.mxu0 0.0
    %837 = vmatpush.msra.mxu0 0.0
    %838 = vmatpush.msra.mxu0 0.0
    %839 = vmatpush.msra.mxu0 0.0
    %840 = vmatpush.msra.mxu0 0.0
    %841 = vmatpush.msra.mxu0 0.0
    %842 = vmatpush.msra.mxu0 0.0
    %843 = vmatpush.msra.mxu0 0.0
    %844 = vmatpush.msra.mxu0 0.0
    %845 = vmatpush.msra.mxu0 0.0
    %846 = vmatpush.msra.mxu0 0.0
    %847 = vmatpush.msra.mxu0 0.0
    %848 = vmatpush.msra.mxu0 0.0
    %849 = vmatpush.msra.mxu0 0.0
    %850 = vmatpush.msra.mxu0 %v830
    %851 = vmatmul.f32.gmra.mxu0 %v833
    %v852 = vpop.f32.mrf.mxu0
    %v853 = vadd.f32 0.0, %v852
    %854 = vdwg.mxu0
    %855 = vrot.lane.b32.xlu0 %v95, 64
    %v856 = vpop.permute.xlu0 %855
    %v859 = vsel %vm632, %v704, 0
    %861 = vmatpush.msra.mxu0 0.0
    %862 = vmatpush.msra.mxu0 0.0
    %863 = vmatpush.msra.mxu0 0.0
    %864 = vmatpush.msra.mxu0 0.0
    %865 = vmatpush.msra.mxu0 0.0
    %866 = vmatpush.msra.mxu0 0.0
    %867 = vmatpush.msra.mxu0 0.0
    %868 = vmatpush.msra.mxu0 0.0
    %869 = vmatpush.msra.mxu0 0.0
    %870 = vmatpush.msra.mxu0 0.0
    %871 = vmatpush.msra.mxu0 0.0
    %872 = vmatpush.msra.mxu0 0.0
    %873 = vmatpush.msra.mxu0 0.0
    %874 = vmatpush.msra.mxu0 0.0
    %875 = vmatpush.msra.mxu0 0.0
    %876 = vmatpush.msra.mxu0 %v856
    %877 = vmatmul.f32.gmra.mxu0 %v859
    %v878 = vpop.f32.mrf.mxu0
    %v879 = vadd.f32 0.0, %v878
    %880 = vdwg.mxu0
    %881 = vrot.lane.b32.xlu0 %v97, 64
    %v882 = vpop.permute.xlu0 %881
    %v885 = vsel %vm632, %v706, 0
    %887 = vmatpush.msra.mxu0 0.0
    %888 = vmatpush.msra.mxu0 0.0
    %889 = vmatpush.msra.mxu0 0.0
    %890 = vmatpush.msra.mxu0 0.0
    %891 = vmatpush.msra.mxu0 0.0
    %892 = vmatpush.msra.mxu0 0.0
    %893 = vmatpush.msra.mxu0 0.0
    %894 = vmatpush.msra.mxu0 0.0
    %895 = vmatpush.msra.mxu0 0.0
    %896 = vmatpush.msra.mxu0 0.0
    %897 = vmatpush.msra.mxu0 0.0
    %898 = vmatpush.msra.mxu0 0.0
    %899 = vmatpush.msra.mxu0 0.0
    %900 = vmatpush.msra.mxu0 0.0
    %901 = vmatpush.msra.mxu0 0.0
    %902 = vmatpush.msra.mxu0 %v882
    %903 = vmatmul.f32.gmra.mxu0 %v885
    %v904 = vpop.f32.mrf.mxu0
    %v905 = vadd.f32 0.0, %v904
    %906 = vdwg.mxu0
    %907 = vrot.lane.b32.xlu0 %v99, 64
    %v908 = vpop.permute.xlu0 %907
    %v911 = vsel %vm632, %v708, 0
    %913 = vmatpush.msra.mxu0 0.0
    %914 = vmatpush.msra.mxu0 0.0
    %915 = vmatpush.msra.mxu0 0.0
    %916 = vmatpush.msra.mxu0 0.0
    %917 = vmatpush.msra.mxu0 0.0
    %918 = vmatpush.msra.mxu0 0.0
    %919 = vmatpush.msra.mxu0 0.0
    %920 = vmatpush.msra.mxu0 0.0
    %921 = vmatpush.msra.mxu0 0.0
    %922 = vmatpush.msra.mxu0 0.0
    %923 = vmatpush.msra.mxu0 0.0
    %924 = vmatpush.msra.mxu0 0.0
    %925 = vmatpush.msra.mxu0 0.0
    %926 = vmatpush.msra.mxu0 0.0
    %927 = vmatpush.msra.mxu0 0.0
    %928 = vmatpush.msra.mxu0 %v908
    %929 = vmatmul.f32.gmra.mxu0 %v911
    %v930 = vpop.f32.mrf.mxu0
    %v931 = vadd.f32 0.0, %v930
    %932 = vdwg.mxu0
    %933 = vrot.lane.b32.xlu0 %v101, 64
    %v934 = vpop.permute.xlu0 %933
    %v937 = vsel %vm632, %v710, 0
    %939 = vmatpush.msra.mxu0 0.0
    %940 = vmatpush.msra.mxu0 0.0
    %941 = vmatpush.msra.mxu0 0.0
    %942 = vmatpush.msra.mxu0 0.0
    %943 = vmatpush.msra.mxu0 0.0
    %944 = vmatpush.msra.mxu0 0.0
    %945 = vmatpush.msra.mxu0 0.0
    %946 = vmatpush.msra.mxu0 0.0
    %947 = vmatpush.msra.mxu0 0.0
    %948 = vmatpush.msra.mxu0 0.0
    %949 = vmatpush.msra.mxu0 0.0
    %950 = vmatpush.msra.mxu0 0.0
    %951 = vmatpush.msra.mxu0 0.0
    %952 = vmatpush.msra.mxu0 0.0
    %953 = vmatpush.msra.mxu0 0.0
    %954 = vmatpush.msra.mxu0 %v934
    %955 = vmatmul.f32.gmra.mxu0 %v937
    %v956 = vpop.f32.mrf.mxu0
    %v957 = vadd.f32 0.0, %v956
    %958 = vdwg.mxu0
    %959 = vrot.lane.b32.xlu0 %v103, 64
    %v960 = vpop.permute.xlu0 %959
    %v963 = vsel %vm632, %v712, 0
    %965 = vmatpush.msra.mxu0 0.0
    %966 = vmatpush.msra.mxu0 0.0
    %967 = vmatpush.msra.mxu0 0.0
    %968 = vmatpush.msra.mxu0 0.0
    %969 = vmatpush.msra.mxu0 0.0
    %970 = vmatpush.msra.mxu0 0.0
    %971 = vmatpush.msra.mxu0 0.0
    %972 = vmatpush.msra.mxu0 0.0
    %973 = vmatpush.msra.mxu0 0.0
    %974 = vmatpush.msra.mxu0 0.0
    %975 = vmatpush.msra.mxu0 0.0
    %976 = vmatpush.msra.mxu0 0.0
    %977 = vmatpush.msra.mxu0 0.0
    %978 = vmatpush.msra.mxu0 0.0
    %979 = vmatpush.msra.mxu0 0.0
    %980 = vmatpush.msra.mxu0 %v960
    %981 = vmatmul.f32.gmra.mxu0 %v963
    %v982 = vpop.f32.mrf.mxu0
    %v983 = vadd.f32 0.0, %v982
    %984 = vdwg.mxu0
    %985 = vrot.lane.b32.xlu0 %v87, 64
    %v986 = vpop.permute.xlu0 %985
    %v989 = vsel %vm632, %v714, 0
    %991 = vmatpush.msra.mxu0 0.0
    %992 = vmatpush.msra.mxu0 0.0
    %993 = vmatpush.msra.mxu0 0.0
    %994 = vmatpush.msra.mxu0 0.0
    %995 = vmatpush.msra.mxu0 0.0
    %996 = vmatpush.msra.mxu0 0.0
    %997 = vmatpush.msra.mxu0 0.0
    %998 = vmatpush.msra.mxu0 0.0
    %999 = vmatpush.msra.mxu0 0.0
    %1000 = vmatpush.msra.mxu0 0.0
    %1001 = vmatpush.msra.mxu0 0.0
    %1002 = vmatpush.msra.mxu0 0.0
    %1003 = vmatpush.msra.mxu0 0.0
    %1004 = vmatpush.msra.mxu0 0.0
    %1005 = vmatpush.msra.mxu0 0.0
    %1006 = vmatpush.msra.mxu0 %v986
    %1007 = vmatmul.f32.gmra.mxu0 %v989
    %v1008 = vpop.f32.mrf.mxu0
    %v1009 = vadd.f32 0.0, %v1008
    %1010 = vdwg.mxu0
    %1011 = vrot.lane.b32.xlu0 %v106, 64
    %v1012 = vpop.permute.xlu0 %1011
    %v1015 = vsel %vm632, %v716, 0
    %1017 = vmatpush.msra.mxu0 0.0
    %1018 = vmatpush.msra.mxu0 0.0
    %1019 = vmatpush.msra.mxu0 0.0
    %1020 = vmatpush.msra.mxu0 0.0
    %1021 = vmatpush.msra.mxu0 0.0
    %1022 = vmatpush.msra.mxu0 0.0
    %1023 = vmatpush.msra.mxu0 0.0
    %1024 = vmatpush.msra.mxu0 0.0
    %1025 = vmatpush.msra.mxu0 0.0
    %1026 = vmatpush.msra.mxu0 0.0
    %1027 = vmatpush.msra.mxu0 0.0
    %1028 = vmatpush.msra.mxu0 0.0
    %1029 = vmatpush.msra.mxu0 0.0
    %1030 = vmatpush.msra.mxu0 0.0
    %1031 = vmatpush.msra.mxu0 0.0
    %1032 = vmatpush.msra.mxu0 %v1012
    %1033 = vmatmul.f32.gmra.mxu0 %v1015
    %v1034 = vpop.f32.mrf.mxu0
    %v1035 = vadd.f32 0.0, %v1034
    %1036 = vdwg.mxu0
    %1037 = vrot.lane.b32.xlu0 %v108, 64
    %v1038 = vpop.permute.xlu0 %1037
    %v1041 = vsel %vm632, %v718, 0
    %1043 = vmatpush.msra.mxu0 0.0
    %1044 = vmatpush.msra.mxu0 0.0
    %1045 = vmatpush.msra.mxu0 0.0
    %1046 = vmatpush.msra.mxu0 0.0
    %1047 = vmatpush.msra.mxu0 0.0
    %1048 = vmatpush.msra.mxu0 0.0
    %1049 = vmatpush.msra.mxu0 0.0
    %1050 = vmatpush.msra.mxu0 0.0
    %1051 = vmatpush.msra.mxu0 0.0
    %1052 = vmatpush.msra.mxu0 0.0
    %1053 = vmatpush.msra.mxu0 0.0
    %1054 = vmatpush.msra.mxu0 0.0
    %1055 = vmatpush.msra.mxu0 0.0
    %1056 = vmatpush.msra.mxu0 0.0
    %1057 = vmatpush.msra.mxu0 0.0
    %1058 = vmatpush.msra.mxu0 %v1038
    %1059 = vmatmul.f32.gmra.mxu0 %v1041
    %v1060 = vpop.f32.mrf.mxu0
    %v1061 = vadd.f32 0.0, %v1060
    %1062 = vdwg.mxu0
    %1063 = vrot.lane.b32.xlu0 %v110, 64
    %v1064 = vpop.permute.xlu0 %1063
    %v1067 = vsel %vm632, %v720, 0
    %1069 = vmatpush.msra.mxu0 0.0
    %1070 = vmatpush.msra.mxu0 0.0
    %1071 = vmatpush.msra.mxu0 0.0
    %1072 = vmatpush.msra.mxu0 0.0
    %1073 = vmatpush.msra.mxu0 0.0
    %1074 = vmatpush.msra.mxu0 0.0
    %1075 = vmatpush.msra.mxu0 0.0
    %1076 = vmatpush.msra.mxu0 0.0
    %1077 = vmatpush.msra.mxu0 0.0
    %1078 = vmatpush.msra.mxu0 0.0
    %1079 = vmatpush.msra.mxu0 0.0
    %1080 = vmatpush.msra.mxu0 0.0
    %1081 = vmatpush.msra.mxu0 0.0
    %1082 = vmatpush.msra.mxu0 0.0
    %1083 = vmatpush.msra.mxu0 0.0
    %1084 = vmatpush.msra.mxu0 %v1064
    %1085 = vmatmul.f32.gmra.mxu0 %v1067
    %v1086 = vpop.f32.mrf.mxu0
    %v1087 = vadd.f32 0.0, %v1086
    %1088 = vdwg.mxu0
    %1089 = vrot.lane.b32.xlu0 %v112, 64
    %v1090 = vpop.permute.xlu0 %1089
    %v1093 = vsel %vm632, %v722, 0
    %1095 = vmatpush.msra.mxu0 0.0
    %1096 = vmatpush.msra.mxu0 0.0
    %1097 = vmatpush.msra.mxu0 0.0
    %1098 = vmatpush.msra.mxu0 0.0
    %1099 = vmatpush.msra.mxu0 0.0
    %1100 = vmatpush.msra.mxu0 0.0
    %1101 = vmatpush.msra.mxu0 0.0
    %1102 = vmatpush.msra.mxu0 0.0
    %1103 = vmatpush.msra.mxu0 0.0
    %1104 = vmatpush.msra.mxu0 0.0
    %1105 = vmatpush.msra.mxu0 0.0
    %1106 = vmatpush.msra.mxu0 0.0
    %1107 = vmatpush.msra.mxu0 0.0
    %1108 = vmatpush.msra.mxu0 0.0
    %1109 = vmatpush.msra.mxu0 0.0
    %1110 = vmatpush.msra.mxu0 %v1090
    %1111 = vmatmul.f32.gmra.mxu0 %v1093
    %v1112 = vpop.f32.mrf.mxu0
    %v1113 = vadd.f32 0.0, %v1112
    %1114 = vdwg.mxu0
    %1115 = vrot.lane.b32.xlu0 %v114, 64
    %v1116 = vpop.permute.xlu0 %1115
    %v1119 = vsel %vm632, %v724, 0
    %1121 = vmatpush.msra.mxu0 0.0
    %1122 = vmatpush.msra.mxu0 0.0
    %1123 = vmatpush.msra.mxu0 0.0
    %1124 = vmatpush.msra.mxu0 0.0
    %1125 = vmatpush.msra.mxu0 0.0
    %1126 = vmatpush.msra.mxu0 0.0
    %1127 = vmatpush.msra.mxu0 0.0
    %1128 = vmatpush.msra.mxu0 0.0
    %1129 = vmatpush.msra.mxu0 0.0
    %1130 = vmatpush.msra.mxu0 0.0
    %1131 = vmatpush.msra.mxu0 0.0
    %1132 = vmatpush.msra.mxu0 0.0
    %1133 = vmatpush.msra.mxu0 0.0
    %1134 = vmatpush.msra.mxu0 0.0
    %1135 = vmatpush.msra.mxu0 0.0
    %1136 = vmatpush.msra.mxu0 %v1116
    %1137 = vmatmul.f32.gmra.mxu0 %v1119
    %v1138 = vpop.f32.mrf.mxu0
    %v1139 = vadd.f32 0.0, %v1138
    %1140 = vdwg.mxu0
    %1141 = vrot.lane.b32.xlu0 %v116, 64
    %v1142 = vpop.permute.xlu0 %1141
    %v1145 = vsel %vm632, %v726, 0
    %1147 = vmatpush.msra.mxu0 0.0
    %1148 = vmatpush.msra.mxu0 0.0
    %1149 = vmatpush.msra.mxu0 0.0
    %1150 = vmatpush.msra.mxu0 0.0
    %1151 = vmatpush.msra.mxu0 0.0
    %1152 = vmatpush.msra.mxu0 0.0
    %1153 = vmatpush.msra.mxu0 0.0
    %1154 = vmatpush.msra.mxu0 0.0
    %1155 = vmatpush.msra.mxu0 0.0
    %1156 = vmatpush.msra.mxu0 0.0
    %1157 = vmatpush.msra.mxu0 0.0
    %1158 = vmatpush.msra.mxu0 0.0
    %1159 = vmatpush.msra.mxu0 0.0
    %1160 = vmatpush.msra.mxu0 0.0
    %1161 = vmatpush.msra.mxu0 0.0
    %1162 = vmatpush.msra.mxu0 %v1142
    %1163 = vmatmul.f32.gmra.mxu0 %v1145
    %v1164 = vpop.f32.mrf.mxu0
    %v1165 = vadd.f32 0.0, %v1164
    %1166 = vdwg.mxu0
    %1167 = vrot.lane.b32.xlu0 %v118, 64
    %v1168 = vpop.permute.xlu0 %1167
    %v1171 = vsel %vm632, %v728, 0
    %1173 = vmatpush.msra.mxu0 0.0
    %1174 = vmatpush.msra.mxu0 0.0
    %1175 = vmatpush.msra.mxu0 0.0
    %1176 = vmatpush.msra.mxu0 0.0
    %1177 = vmatpush.msra.mxu0 0.0
    %1178 = vmatpush.msra.mxu0 0.0
    %1179 = vmatpush.msra.mxu0 0.0
    %1180 = vmatpush.msra.mxu0 0.0
    %1181 = vmatpush.msra.mxu0 0.0
    %1182 = vmatpush.msra.mxu0 0.0
    %1183 = vmatpush.msra.mxu0 0.0
    %1184 = vmatpush.msra.mxu0 0.0
    %1185 = vmatpush.msra.mxu0 0.0
    %1186 = vmatpush.msra.mxu0 0.0
    %1187 = vmatpush.msra.mxu0 0.0
    %1188 = vmatpush.msra.mxu0 %v1168
    %1189 = vmatmul.f32.gmra.mxu0 %v1171
    %v1190 = vpop.f32.mrf.mxu0
    %v1191 = vadd.f32 0.0, %v1190
    %1192 = vdwg.mxu0
    %v1193 = vrcp.pop %v731
    %v1194 = vmul.f32 %v731, %v1193
    %v1195 = vsub.f32 1.0, %v1194
    %v1196 = vmul.f32 %v1193, %v1195
    %v1197 = vadd.f32 %v1193, %v1196
    %vm1198 = vweird.f32 %v731
    %vm1199 = vweird.f32 %v1193
    %vm1200 = vmor %vm1198, %vm1199
    %v1201 = vsel %vm1200, %v1193, %v1197
    %v1202 = vand.u32 2147483647, %v731
    %vm1203 = vcmp.eq.f32.partialorder %v1202, 8.507059e+37
    %v1204 = vand.u32 %v731, 2147483648
    %v1205 = vor.u32 1.1754944e-38, %v1204
    %v1206 = vsel %vm1203, %v1205, %v1201
    %v1207 = vmul.f32 %v801, %v1206
    %v1208 = vrcp.pop %v734
    %v1209 = vmul.f32 %v734, %v1208
    %v1210 = vsub.f32 1.0, %v1209
    %v1211 = vmul.f32 %v1208, %v1210
    %v1212 = vadd.f32 %v1208, %v1211
    %vm1213 = vweird.f32 %v734
    %vm1214 = vweird.f32 %v1208
    %vm1215 = vmor %vm1213, %vm1214
    %v1216 = vsel %vm1215, %v1208, %v1212
    %v1217 = vand.u32 2147483647, %v734
    %vm1218 = vcmp.eq.f32.partialorder %v1217, 8.507059e+37
    %v1219 = vand.u32 %v734, 2147483648
    %v1220 = vor.u32 1.1754944e-38, %v1219
    %v1221 = vsel %vm1218, %v1220, %v1216
    %v1222 = vmul.f32 %v827, %v1221
    %v1223 = vrcp.pop %v737
    %v1224 = vmul.f32 %v737, %v1223
    %v1225 = vsub.f32 1.0, %v1224
    %v1226 = vmul.f32 %v1223, %v1225
    %v1227 = vadd.f32 %v1223, %v1226
    %vm1228 = vweird.f32 %v737
    %vm1229 = vweird.f32 %v1223
    %vm1230 = vmor %vm1228, %vm1229
    %v1231 = vsel %vm1230, %v1223, %v1227
    %v1232 = vand.u32 2147483647, %v737
    %vm1233 = vcmp.eq.f32.partialorder %v1232, 8.507059e+37
    %v1234 = vand.u32 %v737, 2147483648
    %v1235 = vor.u32 1.1754944e-38, %v1234
    %v1236 = vsel %vm1233, %v1235, %v1231
    %v1237 = vmul.f32 %v853, %v1236
    %v1238 = vrcp.pop %v740
    %v1239 = vmul.f32 %v740, %v1238
    %v1240 = vsub.f32 1.0, %v1239
    %v1241 = vmul.f32 %v1238, %v1240
    %v1242 = vadd.f32 %v1238, %v1241
    %vm1243 = vweird.f32 %v740
    %vm1244 = vweird.f32 %v1238
    %vm1245 = vmor %vm1243, %vm1244
    %v1246 = vsel %vm1245, %v1238, %v1242
    %v1247 = vand.u32 2147483647, %v740
    %vm1248 = vcmp.eq.f32.partialorder %v1247, 8.507059e+37
    %v1249 = vand.u32 %v740, 2147483648
    %v1250 = vor.u32 1.1754944e-38, %v1249
    %v1251 = vsel %vm1248, %v1250, %v1246
    %v1252 = vmul.f32 %v879, %v1251
    %v1253 = vrcp.pop %v743
    %v1254 = vmul.f32 %v743, %v1253
    %v1255 = vsub.f32 1.0, %v1254
    %v1256 = vmul.f32 %v1253, %v1255
    %v1257 = vadd.f32 %v1253, %v1256
    %vm1258 = vweird.f32 %v743
    %vm1259 = vweird.f32 %v1253
    %vm1260 = vmor %vm1258, %vm1259
    %v1261 = vsel %vm1260, %v1253, %v1257
    %v1262 = vand.u32 2147483647, %v743
    %vm1263 = vcmp.eq.f32.partialorder %v1262, 8.507059e+37
    %v1264 = vand.u32 %v743, 2147483648
    %v1265 = vor.u32 1.1754944e-38, %v1264
    %v1266 = vsel %vm1263, %v1265, %v1261
    %v1267 = vmul.f32 %v905, %v1266
    %v1268 = vrcp.pop %v746
    %v1269 = vmul.f32 %v746, %v1268
    %v1270 = vsub.f32 1.0, %v1269
    %v1271 = vmul.f32 %v1268, %v1270
    %v1272 = vadd.f32 %v1268, %v1271
    %vm1273 = vweird.f32 %v746
    %vm1274 = vweird.f32 %v1268
    %vm1275 = vmor %vm1273, %vm1274
    %v1276 = vsel %vm1275, %v1268, %v1272
    %v1277 = vand.u32 2147483647, %v746
    %vm1278 = vcmp.eq.f32.partialorder %v1277, 8.507059e+37
    %v1279 = vand.u32 %v746, 2147483648
    %v1280 = vor.u32 1.1754944e-38, %v1279
    %v1281 = vsel %vm1278, %v1280, %v1276
    %v1282 = vmul.f32 %v931, %v1281
    %v1283 = vrcp.pop %v749
    %v1284 = vmul.f32 %v749, %v1283
    %v1285 = vsub.f32 1.0, %v1284
    %v1286 = vmul.f32 %v1283, %v1285
    %v1287 = vadd.f32 %v1283, %v1286
    %vm1288 = vweird.f32 %v749
    %vm1289 = vweird.f32 %v1283
    %vm1290 = vmor %vm1288, %vm1289
    %v1291 = vsel %vm1290, %v1283, %v1287
    %v1292 = vand.u32 2147483647, %v749
    %vm1293 = vcmp.eq.f32.partialorder %v1292, 8.507059e+37
    %v1294 = vand.u32 %v749, 2147483648
    %v1295 = vor.u32 1.1754944e-38, %v1294
    %v1296 = vsel %vm1293, %v1295, %v1291
    %v1297 = vmul.f32 %v957, %v1296
    %v1298 = vrcp.pop %v752
    %v1299 = vmul.f32 %v752, %v1298
    %v1300 = vsub.f32 1.0, %v1299
    %v1301 = vmul.f32 %v1298, %v1300
    %v1302 = vadd.f32 %v1298, %v1301
    %vm1303 = vweird.f32 %v752
    %vm1304 = vweird.f32 %v1298
    %vm1305 = vmor %vm1303, %vm1304
    %v1306 = vsel %vm1305, %v1298, %v1302
    %v1307 = vand.u32 2147483647, %v752
    %vm1308 = vcmp.eq.f32.partialorder %v1307, 8.507059e+37
    %v1309 = vand.u32 %v752, 2147483648
    %v1310 = vor.u32 1.1754944e-38, %v1309
    %v1311 = vsel %vm1308, %v1310, %v1306
    %v1312 = vmul.f32 %v983, %v1311
    %v1313 = vrcp.pop %v755
    %v1314 = vmul.f32 %v755, %v1313
    %v1315 = vsub.f32 1.0, %v1314
    %v1316 = vmul.f32 %v1313, %v1315
    %v1317 = vadd.f32 %v1313, %v1316
    %vm1318 = vweird.f32 %v755
    %vm1319 = vweird.f32 %v1313
    %vm1320 = vmor %vm1318, %vm1319
    %v1321 = vsel %vm1320, %v1313, %v1317
    %v1322 = vand.u32 2147483647, %v755
    %vm1323 = vcmp.eq.f32.partialorder %v1322, 8.507059e+37
    %v1324 = vand.u32 %v755, 2147483648
    %v1325 = vor.u32 1.1754944e-38, %v1324
    %v1326 = vsel %vm1323, %v1325, %v1321
    %v1327 = vmul.f32 %v1009, %v1326
    %v1328 = vrcp.pop %v758
    %v1329 = vmul.f32 %v758, %v1328
    %v1330 = vsub.f32 1.0, %v1329
    %v1331 = vmul.f32 %v1328, %v1330
    %v1332 = vadd.f32 %v1328, %v1331
    %vm1333 = vweird.f32 %v758
    %vm1334 = vweird.f32 %v1328
    %vm1335 = vmor %vm1333, %vm1334
    %v1336 = vsel %vm1335, %v1328, %v1332
    %v1337 = vand.u32 2147483647, %v758
    %vm1338 = vcmp.eq.f32.partialorder %v1337, 8.507059e+37
    %v1339 = vand.u32 %v758, 2147483648
    %v1340 = vor.u32 1.1754944e-38, %v1339
    %v1341 = vsel %vm1338, %v1340, %v1336
    %v1342 = vmul.f32 %v1035, %v1341
    %v1343 = vrcp.pop %v761
    %v1344 = vmul.f32 %v761, %v1343
    %v1345 = vsub.f32 1.0, %v1344
    %v1346 = vmul.f32 %v1343, %v1345
    %v1347 = vadd.f32 %v1343, %v1346
    %vm1348 = vweird.f32 %v761
    %vm1349 = vweird.f32 %v1343
    %vm1350 = vmor %vm1348, %vm1349
    %v1351 = vsel %vm1350, %v1343, %v1347
    %v1352 = vand.u32 2147483647, %v761
    %vm1353 = vcmp.eq.f32.partialorder %v1352, 8.507059e+37
    %v1354 = vand.u32 %v761, 2147483648
    %v1355 = vor.u32 1.1754944e-38, %v1354
    %v1356 = vsel %vm1353, %v1355, %v1351
    %v1357 = vmul.f32 %v1061, %v1356
    %v1358 = vrcp.pop %v764
    %v1359 = vmul.f32 %v764, %v1358
    %v1360 = vsub.f32 1.0, %v1359
    %v1361 = vmul.f32 %v1358, %v1360
    %v1362 = vadd.f32 %v1358, %v1361
    %vm1363 = vweird.f32 %v764
    %vm1364 = vweird.f32 %v1358
    %vm1365 = vmor %vm1363, %vm1364
    %v1366 = vsel %vm1365, %v1358, %v1362
    %v1367 = vand.u32 2147483647, %v764
    %vm1368 = vcmp.eq.f32.partialorder %v1367, 8.507059e+37
    %v1369 = vand.u32 %v764, 2147483648
    %v1370 = vor.u32 1.1754944e-38, %v1369
    %v1371 = vsel %vm1368, %v1370, %v1366
    %v1372 = vmul.f32 %v1087, %v1371
    %v1373 = vrcp.pop %v767
    %v1374 = vmul.f32 %v767, %v1373
    %v1375 = vsub.f32 1.0, %v1374
    %v1376 = vmul.f32 %v1373, %v1375
    %v1377 = vadd.f32 %v1373, %v1376
    %vm1378 = vweird.f32 %v767
    %vm1379 = vweird.f32 %v1373
    %vm1380 = vmor %vm1378, %vm1379
    %v1381 = vsel %vm1380, %v1373, %v1377
    %v1382 = vand.u32 2147483647, %v767
    %vm1383 = vcmp.eq.f32.partialorder %v1382, 8.507059e+37
    %v1384 = vand.u32 %v767, 2147483648
    %v1385 = vor.u32 1.1754944e-38, %v1384
    %v1386 = vsel %vm1383, %v1385, %v1381
    %v1387 = vmul.f32 %v1113, %v1386
    %v1388 = vrcp.pop %v770
    %v1389 = vmul.f32 %v770, %v1388
    %v1390 = vsub.f32 1.0, %v1389
    %v1391 = vmul.f32 %v1388, %v1390
    %v1392 = vadd.f32 %v1388, %v1391
    %vm1393 = vweird.f32 %v770
    %vm1394 = vweird.f32 %v1388
    %vm1395 = vmor %vm1393, %vm1394
    %v1396 = vsel %vm1395, %v1388, %v1392
    %v1397 = vand.u32 2147483647, %v770
    %vm1398 = vcmp.eq.f32.partialorder %v1397, 8.507059e+37
    %v1399 = vand.u32 %v770, 2147483648
    %v1400 = vor.u32 1.1754944e-38, %v1399
    %v1401 = vsel %vm1398, %v1400, %v1396
    %v1402 = vmul.f32 %v1139, %v1401
    %v1403 = vrcp.pop %v773
    %v1404 = vmul.f32 %v773, %v1403
    %v1405 = vsub.f32 1.0, %v1404
    %v1406 = vmul.f32 %v1403, %v1405
    %v1407 = vadd.f32 %v1403, %v1406
    %vm1408 = vweird.f32 %v773
    %vm1409 = vweird.f32 %v1403
    %vm1410 = vmor %vm1408, %vm1409
    %v1411 = vsel %vm1410, %v1403, %v1407
    %v1412 = vand.u32 2147483647, %v773
    %vm1413 = vcmp.eq.f32.partialorder %v1412, 8.507059e+37
    %v1414 = vand.u32 %v773, 2147483648
    %v1415 = vor.u32 1.1754944e-38, %v1414
    %v1416 = vsel %vm1413, %v1415, %v1411
    %v1417 = vmul.f32 %v1165, %v1416
    %v1418 = vrcp.pop %v776
    %v1419 = vmul.f32 %v776, %v1418
    %v1420 = vsub.f32 1.0, %v1419
    %v1421 = vmul.f32 %v1418, %v1420
    %v1422 = vadd.f32 %v1418, %v1421
    %vm1423 = vweird.f32 %v776
    %vm1424 = vweird.f32 %v1418
    %vm1425 = vmor %vm1423, %vm1424
    %v1426 = vsel %vm1425, %v1418, %v1422
    %v1427 = vand.u32 2147483647, %v776
    %vm1428 = vcmp.eq.f32.partialorder %v1427, 8.507059e+37
    %v1429 = vand.u32 %v776, 2147483648
    %v1430 = vor.u32 1.1754944e-38, %v1429
    %v1431 = vsel %vm1428, %v1430, %v1426
    %v1432 = vmul.f32 %v1191, %v1431
    %1434 = vrot.lane.b32.xlu0 %v1222, 4
    %v1435 = vpop.permute.xlu0 %1434
    %1438 = vrot.lane.b32.xlu0 %v1237, 8
    %v1439 = vpop.permute.xlu0 %1438
    %1442 = vrot.lane.b32.xlu0 %v1252, 12
    %v1443 = vpop.permute.xlu0 %1442
    %1446 = vrot.lane.b32.xlu0 %v1267, 16
    %v1447 = vpop.permute.xlu0 %1446
    %1450 = vrot.lane.b32.xlu0 %v1282, 20
    %v1451 = vpop.permute.xlu0 %1450
    %1454 = vrot.lane.b32.xlu0 %v1297, 24
    %v1455 = vpop.permute.xlu0 %1454
    %1458 = vrot.lane.b32.xlu0 %v1312, 28
    %v1459 = vpop.permute.xlu0 %1458
    %v1461 = vsel %vm121, %v1207, %v1435
    %v1462 = vsel %vm632, %v1461, %v1439
    %vm1463 = vcmask 97280
    %v1464 = vsel %vm1463, %v1462, %v1443
    %vm1465 = vcmask 130048
    %v1466 = vsel %vm1465, %v1464, %v1447
    %vm1467 = vcmask 162816
    %v1468 = vsel %vm1467, %v1466, %v1451
    %vm1469 = vcmask 195584
    %v1470 = vsel %vm1469, %v1468, %v1455
    %vm1471 = vcmask 228352
    %v1472 = vsel %vm1471, %v1470, %v1459
    %1474 = vrot.lane.b32.xlu0 %v1342, 4
    %v1475 = vpop.permute.xlu0 %1474
    %1478 = vrot.lane.b32.xlu0 %v1357, 8
    %v1479 = vpop.permute.xlu0 %1478
    %1482 = vrot.lane.b32.xlu0 %v1372, 12
    %v1483 = vpop.permute.xlu0 %1482
    %1486 = vrot.lane.b32.xlu0 %v1387, 16
    %v1487 = vpop.permute.xlu0 %1486
    %1490 = vrot.lane.b32.xlu0 %v1402, 20
    %v1491 = vpop.permute.xlu0 %1490
    %1494 = vrot.lane.b32.xlu0 %v1417, 24
    %v1495 = vpop.permute.xlu0 %1494
    %1498 = vrot.lane.b32.xlu0 %v1432, 28
    %v1499 = vpop.permute.xlu0 %1498
    %v1501 = vsel %vm121, %v1327, %v1475
    %v1502 = vsel %vm632, %v1501, %v1479
    %v1503 = vsel %vm1463, %v1502, %v1483
    %v1504 = vsel %vm1465, %v1503, %v1487
    %v1505 = vsel %vm1467, %v1504, %v1491
    %v1506 = vsel %vm1469, %v1505, %v1495
    %v1507 = vsel %vm1471, %v1506, %v1499
    %v1508 = vld [vmem:[#allocation5] sm:$0xff]
    %v1509 = vld [vmem:[#allocation5 + $0x8] sm:$0xff]
    %v1510 = vld [vmem:[#allocation5 + $0x10] sm:$0xff]
    %v1511 = vld [vmem:[#allocation5 + $0x18] sm:$0xff]
    %v1512 = vld [vmem:[%s4] sm:$0x1]
    %v1514 = vperm.slane %v1512, 0
    %v1517 = vsel %vm59, %v1472, 0
    %v1520 = vsel %vm59, %v1507, 0
    %1522 = vmatpush.msra.mxu0 0.0
    %1523 = vmatpush.msra.mxu0 0.0
    %1524 = vmatpush.msra.mxu0 0.0
    %1525 = vmatpush.msra.mxu0 0.0
    %1526 = vmatpush.msra.mxu0 0.0
    %1527 = vmatpush.msra.mxu0 0.0
    %1528 = vmatpush.msra.mxu0 0.0
    %1529 = vmatpush.msra.mxu0 0.0
    %1530 = vmatpush.msra.mxu0 0.0
    %1531 = vmatpush.msra.mxu0 0.0
    %1532 = vmatpush.msra.mxu0 0.0
    %1533 = vmatpush.msra.mxu0 0.0
    %1534 = vmatpush.msra.mxu0 %v1511
    %1535 = vmatpush.msra.mxu0 %v1510
    %1536 = vmatpush.msra.mxu0 %v1509
    %1537 = vmatpush.msra.mxu0 %v1508
    %1538 = vmatmul.f32.gmra.mxu0 %v1517
    %v1539 = vpop.f32.mrf.mxu0
    %v1540 = vadd.f32 %v1514, %v1539
    %1541 = vmatmul.f32.gmra.mxu0 %v1520
    %v1542 = vpop.f32.mrf.mxu0
    %v1543 = vadd.f32 %v1514, %v1542
    %1544 = vdwg.mxu0
    %1545 = vst.msk [vmem:[#allocation7] sm:$0xff] %vm59, %v1540
    %1546 = vst.msk [vmem:[#allocation7 + $0x8] sm:$0xff] %vm59, %v1543
    // Predicated region
    $region30: #{tpu_custom_call.1} parent=1 // pred_check
      _
    $region31: #{tpu_custom_call.1} parent=1 // pred_check_branch
      %1548 = sbr.rel (0) target = $region33
    $region32: #{tpu_custom_call.1} parent=1 // pred_region
      %1550 = vsyncadd [#allocation4], 0
      %s1551 = sshll.u32 [#allocation7], 4
      %s1552 = int_to_ptr.vmem [resolvable:$true] %s1551
      %s1553 = sshll.u32 %s5, 4
      %s1554 = int_to_ptr.hbm [resolvable:$true] %s1553
      %1559 = dma.vmem_to_hbm [thread:$0]  %s1552, 256, %s1554, [#allocation4], 128, 128, 8
    $region33: #{tpu_custom_call.1} parent=1 // pred_fallthru
      _
    // Predicated region
    $region34: #{tpu_custom_call.1} parent=1 // pred_check
      _
    $region35: #{tpu_custom_call.1} parent=1 // pred_check_branch
      %1561 = sbr.rel (0) target = $region37
    $region36: #{tpu_custom_call.1} parent=1 // pred_region
      %1563 = dma.done [#allocation4], 256
    $region37: #{tpu_custom_call.1} parent=1 // pred_fallthru
      _
    %1564 = vsyncpa [#allocation3], 1
    %1565 = vsyncpa [#allocation6], 1
    %1566 = vsyncpa [#allocation4], 1

</llo_original>
